<compile_context>
chip_gen: v6e
topology: v6e:2x2x1
jax: 0.10.0
libtpu: 0.0.40
codegen_flags: <defaults>
</compile_context>

<pallas_src>
import jax
import jax.numpy as jnp
from jax import lax
from jax.experimental import pallas as pl
from jax.experimental.pallas import tpu as pltpu


def _round_up(x, m):
    return ((x + m - 1) // m) * m


# ----------------------------------------------------------------------------
# Fused kernel: GRU (phase 1, grid step 0) + attention/gen/copy (every step).
# ----------------------------------------------------------------------------
def _decoder_kernel(x_ref, h0_ref, wih_ref, whh_ref, bih_ref, bhh_ref,
                    enc_ref, mask_ref, wac_ref, wout_ref, wgen_ref,
                    packed_ref, hfin_ref, dec_scratch):
    b = pl.program_id(0)
    B, H = h0_ref.shape                  # (batch, hidden)
    _, T, P = packed_ref.shape           # (1, dec_len, packed_width)
    _, S, A = enc_ref.shape              # (1, enc_len, attention_state)
    V = wgen_ref.shape[1]
    neg_inf = jnp.float32(-jnp.inf)

    # ---- Phase 1 (grid step 0 only): batched GRU over all B.  Hidden states
    # live in the persistent VMEM scratch (row layout: b * T + t) and never
    # round-trip through HBM.
    @pl.when(b == 0)
    def _():
        # Hoisted input projection for every (t, b): one (T*B, I) x (I, 3H)
        # matmul instead of T tiny ones inside the serial recurrence.
        # x_ref rows are time-major: row t*B + bb holds x[bb, t].
        gi_all = (jnp.dot(x_ref[...], wih_ref[...],
                          preferred_element_type=jnp.float32) + bih_ref[...])
        whh = whh_ref[...]               # (H, 3H), gate order r, z, n
        bhh = bhh_ref[...]               # (1, 3H)
        h = h0_ref[...]                  # (B, H)

        # T is small & static: fully unroll (gives the LLO scheduler the whole
        # serial chain; all slice starts are static).
        for t in range(T):
            gi = gi_all[t * B:(t + 1) * B]                         # (B, 3H)
            gh = jnp.dot(h, whh, preferred_element_type=jnp.float32) + bhh
            r = jax.nn.sigmoid(gi[:, 0:H] + gh[:, 0:H])
            z = jax.nn.sigmoid(gi[:, H:2 * H] + gh[:, H:2 * H])
            n = jnp.tanh(gi[:, 2 * H:3 * H] + r * gh[:, 2 * H:3 * H])
            h = (1.0 - z) * n + z * h
            for bb in range(B):          # static unroll (batch-major scratch)
                dec_scratch[pl.ds(bb * T + t, 1), :] = h[bb:bb + 1, :]
        hfin_ref[...] = h                # GRU final hidden state (B, H)

    # ---- Phase 2 (every grid step): attention + output transform + scores
    # for batch element b, reading the GRU states straight from VMEM scratch.
    dec = dec_scratch[pl.ds(pl.multiple_of(b * T, T), T), :]       # (T, H)
    enc = enc_ref[0]                                               # (S, A)
    mask = mask_ref[0]                                             # (1, S)

    # Merged attention/copy encoder projection: single (S, A) x (A, 2H) matmul.
    enc_proj = jnp.dot(enc, wac_ref[...], preferred_element_type=jnp.float32)
    enc_attn = enc_proj[:, 0:H]                                    # (S, H)
    enc_copy = enc_proj[:, H:2 * H]                                # (S, H)

    # attention scores = dec @ enc_attn^T -> (T, S), masked softmax
    scores = lax.dot_general(dec, enc_attn, (((1,), (1,)), ((), ())),
                             preferred_element_type=jnp.float32)
    scores = jnp.where(mask > 0.5, neg_inf, scores)
    m = jnp.max(scores, axis=-1, keepdims=True)
    e = jnp.exp(scores - m)
    attn = e / jnp.sum(e, axis=-1, keepdims=True)

    ctx = jnp.dot(attn, enc, preferred_element_type=jnp.float32)   # (T, A)

    # decoder_states = tanh([ctx | dec] @ W_out^T)  -- one merged matmul
    cat = jnp.concatenate([ctx, dec], axis=-1)                     # (T, A+H)
    new_dec = jnp.tanh(jnp.dot(cat, wout_ref[...],
                               preferred_element_type=jnp.float32))

    gen = jnp.dot(new_dec, wgen_ref[...],
                  preferred_element_type=jnp.float32)              # (T, V)
    copy_sc = lax.dot_general(new_dec, enc_copy, (((1,), (1,)), ((), ())),
                              preferred_element_type=jnp.float32)  # (T, S)
    copy_sc = jnp.where(mask > 0.5, neg_inf, copy_sc)

    # Lane-dense packed store: one (T, P) slab with P a multiple of 128.
    pieces = [new_dec, gen, copy_sc]
    pad = P - (H + V + S)
    if pad > 0:
        pieces.append(jnp.zeros((T, pad), jnp.float32))
    packed_ref[0] = jnp.concatenate(pieces, axis=-1)


# ----------------------------------------------------------------------------
# Parameter init (deterministic, mirrors the nn.Module's parameter shapes).
# ----------------------------------------------------------------------------
def init_decoder_params(key, input_size, hidden_size, attention_state_size,
                        vocab_size):
    H, I, A, V = hidden_size, input_size, attention_state_size, vocab_size
    ks = jax.random.split(key, 8)
    s = 1.0 / jnp.sqrt(jnp.float32(H))
    so = 1.0 / jnp.sqrt(jnp.float32(A + H))
    return dict(
        # nn.GRU (PyTorch layout: weight_ih (3H, I), weight_hh (3H, H))
        w_ih=jax.random.uniform(ks[0], (3 * H, I), jnp.float32, -s, s),
        w_hh=jax.random.uniform(ks[1], (3 * H, H), jnp.float32, -s, s),
        b_ih=jax.random.uniform(ks[2], (3 * H,), jnp.float32, -s, s),
        b_hh=jax.random.uniform(ks[3], (3 * H,), jnp.float32, -s, s),
        # attention_encoder_hidden_transform_matrix (A, H), torch.randn
        w_attn=jax.random.normal(ks[4], (A, H), jnp.float32),
        # attention_output_layer: Linear(A+H, H, bias=False), weight (H, A+H)
        w_out=jax.random.uniform(ks[5], (H, A + H), jnp.float32, -so, so),
        # generation_output_matrix (H, V), torch.randn
        w_gen=jax.random.normal(ks[6], (H, V), jnp.float32),
        # copy_encoder_hidden_transform_matrix (A, H), torch.randn
        w_copy=jax.random.normal(ks[7], (A, H), jnp.float32),
    )


def pack_decoder_params(params):
    """One-time repack into kernel-friendly layout (transposes / merges)."""
    return dict(
        w_ih_t=params["w_ih"].T,                               # (I, 3H)
        w_hh_t=params["w_hh"].T,                               # (H, 3H)
        b_ih=params["b_ih"].reshape(1, -1),                    # (1, 3H)
        b_hh=params["b_hh"].reshape(1, -1),                    # (1, 3H)
        w_ac=jnp.concatenate([params["w_attn"], params["w_copy"]], axis=1),
        w_out_t=params["w_out"].T,                             # (A+H, H)
        w_gen=params["w_gen"],                                 # (H, V)
    )


# ----------------------------------------------------------------------------
# Forward wrapper (single fused pallas_call).
# ----------------------------------------------------------------------------
@jax.jit
def decoder_forward(kparams, initial_state, decoder_input_embeddings,
                    encoder_hidden_states, masks):
    """masks: bool (B, 1, S); True marks padded encoder positions."""
    B, T, I = decoder_input_embeddings.shape
    _, S, A = encoder_hidden_states.shape
    H = kparams["w_hh_t"].shape[0]
    V = kparams["w_gen"].shape[1]
    P = _round_up(H + V + S, 128)

    h0 = initial_state[0]                                       # (B, H)
    # time-major flatten: row t*B + b holds x[b, t]
    x_flat = jnp.transpose(decoder_input_embeddings, (1, 0, 2)).reshape(T * B, I)
    mask_f = masks.astype(jnp.float32)                          # (B, 1, S)

    def full(shp):
        return pl.BlockSpec(shp, lambda b: (0,) * len(shp))

    packed_out, h_fin = pl.pallas_call(
        _decoder_kernel,
        grid=(B,),
        in_specs=[
            full((T * B, I)),                                   # x_flat
            full((B, H)),                                       # h0
            full((I, 3 * H)),                                   # w_ih^T
            full((H, 3 * H)),                                   # w_hh^T
            full((1, 3 * H)),                                   # b_ih
            full((1, 3 * H)),                                   # b_hh
            pl.BlockSpec((1, S, A), lambda b: (b, 0, 0)),       # enc
            pl.BlockSpec((1, 1, S), lambda b: (b, 0, 0)),       # mask
            full((A, 2 * H)),                                   # [w_attn|w_copy]
            full((A + H, H)),                                   # w_out^T
            full((H, V)),                                       # w_gen
        ],
        out_specs=[
            pl.BlockSpec((1, T, P), lambda b: (b, 0, 0)),       # packed slab
            full((B, H)),                                       # GRU final h
        ],
        out_shape=(jax.ShapeDtypeStruct((B, T, P), jnp.float32),
                   jax.ShapeDtypeStruct((B, H), jnp.float32)),
        scratch_shapes=[pltpu.VMEM((B * T, H), jnp.float32)],   # GRU states
        # "arbitrary": later grid steps reuse the scratch written at step 0,
        # so the batch axis must execute sequentially on one core.
        compiler_params=pltpu.CompilerParams(
            dimension_semantics=("arbitrary",)),
    )(x_flat, h0, kparams["w_ih_t"], kparams["w_hh_t"],
      kparams["b_ih"], kparams["b_hh"],
      encoder_hidden_states, mask_f,
      kparams["w_ac"], kparams["w_out_t"], kparams["w_gen"])

    new_dec = packed_out[:, :, :H]                              # (B, T, H)
    gen_scores = packed_out[:, :, H:H + V]                      # (B, T, V)
    copy_scores = packed_out[:, :, H + V:H + V + S]             # (B, T, S)
    decoder_final_state = h_fin[None]                           # (1, B, H)
    return new_dec, decoder_final_state, gen_scores, copy_scores


# ----------------------------------------------------------------------------
# Pure-JAX reference (mirrors PyTorch semantics) for validation.
# ----------------------------------------------------------------------------
def decoder_forward_ref(params, initial_state, dec_emb, enc, masks):
    w_ih, w_hh = params["w_ih"], params["w_hh"]
    b_ih, b_hh = params["b_ih"], params["b_hh"]

    def gru_cell(h, x_t):
        gi = x_t @ w_ih.T + b_ih
        gh = h @ w_hh.T + b_hh
        i_r, i_z, i_n = jnp.split(gi, 3, axis=-1)
        h_r, h_z, h_n = jnp.split(gh, 3, axis=-1)
        r = jax.nn.sigmoid(i_r + h_r)
        z = jax.nn.sigmoid(i_z + h_z)
        n = jnp.tanh(i_n + r * h_n)
        h_new = (1.0 - z) * n + z * h
        return h_new, h_new

    h0 = initial_state[0]
    h_fin, states = lax.scan(gru_cell, h0, jnp.transpose(dec_emb, (1, 0, 2)))
    dec_states = jnp.transpose(states, (1, 0, 2))               # (B, T, H)

    scores = jnp.einsum("bsa,ah,bth->bts", enc, params["w_attn"], dec_states)
    scores = jnp.where(masks, -jnp.inf, scores)
    attn = jax.nn.softmax(scores, axis=-1)
    ctx = jnp.einsum("bts,bsa->bta", attn, enc)
    cat = jnp.concatenate([ctx, dec_states], axis=-1)
    new_dec = jnp.tanh(jnp.einsum("btk,hk->bth", cat, params["w_out"]))
    gen = jnp.einsum("bth,hv->btv", new_dec, params["w_gen"])
    copy = jnp.einsum("bsa,ah,bth->bts", enc, params["w_copy"], new_dec)
    copy = jnp.where(masks, -jnp.inf, copy)
    return new_dec, h_fin[None], gen, copy


if __name__ == "__main__":
    B, T, S = 2, 8, 12                 # batch, decoder len, encoder len
    input_size, hidden_size = 32, 32
    attention_state_size = 48
    vocab_size = 64                    # len(embedding_store.nl_vocabulary)

    key = jax.random.PRNGKey(0)
    k_par, k_h0, k_x, k_enc = jax.random.split(key, 4)
    params = init_decoder_params(k_par, input_size, hidden_size,
                                 attention_state_size, vocab_size)
    kparams = pack_decoder_params(params)       # one-time repack

    initial_state = jax.random.normal(k_h0, (1, B, hidden_size), jnp.float32)
    dec_emb = jax.random.normal(k_x, (B, T, input_size), jnp.float32)
    enc = jax.random.normal(k_enc, (B, S, attention_state_size), jnp.float32)
    # boolean padding mask (True == masked); last 3 positions of batch 1 padded
    masks = jnp.zeros((B, 1, S), dtype=bool).at[1, 0, S - 3:].set(True)

    outs = jax.block_until_ready(
        decoder_forward(kparams, initial_state, dec_emb, enc, masks))
    refs = decoder_forward_ref(params, initial_state, dec_emb, enc, masks)

    names = ("decoder_states", "decoder_final_state",
             "generation_scores", "copy_scores")
    for name, o, r in zip(names, outs, refs):
        assert o.shape == r.shape, (name, o.shape, r.shape)
        assert bool(jnp.allclose(o, r, rtol=1e-3, atol=1e-3)), name

    print("KERNEL_OK")
</pallas_src>

<mosaic_0001>
module attributes {stable_mosaic.version = 11 : i64} {
  func.func @_decoder_kernel(%arg0: i32, %arg1: memref<16x32xf32, #tpu.memory_space<vmem>>, %arg2: memref<2x32xf32, #tpu.memory_space<vmem>>, %arg3: memref<32x96xf32, #tpu.memory_space<vmem>>, %arg4: memref<32x96xf32, #tpu.memory_space<vmem>>, %arg5: memref<1x96xf32, #tpu.memory_space<vmem>>, %arg6: memref<1x96xf32, #tpu.memory_space<vmem>>, %arg7: memref<1x12x48xf32, #tpu.memory_space<vmem>>, %arg8: memref<1x1x12xf32, #tpu.memory_space<vmem>>, %arg9: memref<48x64xf32, #tpu.memory_space<vmem>>, %arg10: memref<80x32xf32, #tpu.memory_space<vmem>>, %arg11: memref<32x64xf32, #tpu.memory_space<vmem>>, %arg12: memref<1x8x128xf32, #tpu.memory_space<vmem>>, %arg13: memref<2x32xf32, #tpu.memory_space<vmem>>, %arg14: memref<16x32xf32, #tpu.memory_space<vmem>>) attributes {dimension_semantics = [#tpu.dimension_semantics<arbitrary>], iteration_bounds = array<i64: 2>, scalar_prefetch = 0 : i64, scratch_operands = 1 : i64, tpu.core_type = #tpu.core_type<tc>, window_params = [{pipeline_mode = #tpu.pipeline_mode<synchronous>, transform_indices = @transform_0, window_bounds = array<i64: 16, 32>}, {pipeline_mode = #tpu.pipeline_mode<synchronous>, transform_indices = @transform_1, window_bounds = array<i64: 2, 32>}, {pipeline_mode = #tpu.pipeline_mode<synchronous>, transform_indices = @transform_2, window_bounds = array<i64: 32, 96>}, {pipeline_mode = #tpu.pipeline_mode<synchronous>, transform_indices = @transform_3, window_bounds = array<i64: 32, 96>}, {pipeline_mode = #tpu.pipeline_mode<synchronous>, transform_indices = @transform_4, window_bounds = array<i64: 1, 96>}, {pipeline_mode = #tpu.pipeline_mode<synchronous>, transform_indices = @transform_5, window_bounds = array<i64: 1, 96>}, {transform_indices = @transform_6, window_bounds = array<i64: 1, 12, 48>}, {transform_indices = @transform_7, window_bounds = array<i64: 1, 1, 12>}, {pipeline_mode = #tpu.pipeline_mode<synchronous>, transform_indices = @transform_8, window_bounds = array<i64: 48, 64>}, {pipeline_mode = #tpu.pipeline_mode<synchronous>, transform_indices = @transform_9, window_bounds = array<i64: 80, 32>}, {pipeline_mode = #tpu.pipeline_mode<synchronous>, transform_indices = @transform_10, window_bounds = array<i64: 32, 64>}, {transform_indices = @transform_11, window_bounds = array<i64: 1, 8, 128>}, {pipeline_mode = #tpu.pipeline_mode<synchronous>, transform_indices = @transform_12, window_bounds = array<i64: 2, 32>}]} {
    %c0_i32 = arith.constant 0 : i32
    %0 = arith.cmpi eq, %arg0, %c0_i32 : i32
    %1 = arith.extui %0 : i1 to i32
    %c0_i32_0 = arith.constant 0 : i32
    %2 = arith.cmpi ne, %1, %c0_i32_0 : i32
    scf.if %2 {
      %c0_28 = arith.constant 0 : index
      %c0_29 = arith.constant 0 : index
      %50 = vector.load %arg1[%c0_28, %c0_29] : memref<16x32xf32, #tpu.memory_space<vmem>>, vector<16x32xf32>
      %c0_30 = arith.constant 0 : index
      %c0_31 = arith.constant 0 : index
      %51 = vector.load %arg3[%c0_30, %c0_31] : memref<32x96xf32, #tpu.memory_space<vmem>>, vector<32x96xf32>
      %cst_32 = arith.constant dense<0.000000e+00> : vector<16x96xf32>
      %52 = tpu.matmul %50, %51, %cst_32 {dimension_numbers = #tpu.dot_dimension_numbers<[1], [0], [0], [1], [0, 0, 1, 1], [], []>} : vector<16x32xf32>, vector<32x96xf32>, vector<16x96xf32> -> vector<16x96xf32>
      %c0_33 = arith.constant 0 : index
      %c0_34 = arith.constant 0 : index
      %53 = vector.load %arg5[%c0_33, %c0_34] : memref<1x96xf32, #tpu.memory_space<vmem>>, vector<1x96xf32>
      %54 = vector.broadcast %53 : vector<1x96xf32> to vector<16x96xf32>
      %55 = arith.addf %52, %54 : vector<16x96xf32>
      %c0_35 = arith.constant 0 : index
      %c0_36 = arith.constant 0 : index
      %56 = vector.load %arg4[%c0_35, %c0_36] : memref<32x96xf32, #tpu.memory_space<vmem>>, vector<32x96xf32>
      %c0_37 = arith.constant 0 : index
      %c0_38 = arith.constant 0 : index
      %57 = vector.load %arg6[%c0_37, %c0_38] : memref<1x96xf32, #tpu.memory_space<vmem>>, vector<1x96xf32>
      %c0_39 = arith.constant 0 : index
      %c0_40 = arith.constant 0 : index
      %58 = vector.load %arg2[%c0_39, %c0_40] : memref<2x32xf32, #tpu.memory_space<vmem>>, vector<2x32xf32>
      %59 = vector.extract_strided_slice %55 {offsets = [0, 0], sizes = [2, 96], strides = [1, 1]} : vector<16x96xf32> to vector<2x96xf32>
      %cst_41 = arith.constant dense<0.000000e+00> : vector<2x96xf32>
      %60 = tpu.matmul %58, %56, %cst_41 {dimension_numbers = #tpu.dot_dimension_numbers<[1], [0], [0], [1], [0, 0, 1, 1], [], []>} : vector<2x32xf32>, vector<32x96xf32>, vector<2x96xf32> -> vector<2x96xf32>
      %61 = vector.broadcast %57 : vector<1x96xf32> to vector<2x96xf32>
      %62 = arith.addf %60, %61 : vector<2x96xf32>
      %63 = vector.extract_strided_slice %59 {offsets = [0, 0], sizes = [2, 32], strides = [1, 1]} : vector<2x96xf32> to vector<2x32xf32>
      %64 = vector.extract_strided_slice %62 {offsets = [0, 0], sizes = [2, 32], strides = [1, 1]} : vector<2x96xf32> to vector<2x32xf32>
      %65 = arith.addf %63, %64 : vector<2x32xf32>
      %66 = arith.negf %65 : vector<2x32xf32>
      %67 = math.exp %66 : vector<2x32xf32>
      %cst_42 = arith.constant 1.000000e+00 : f32
      %68 = vector.broadcast %cst_42 : f32 to vector<2x32xf32>
      %69 = arith.addf %68, %67 : vector<2x32xf32>
      %70 = arith.divf %68, %69 : vector<2x32xf32>
      %71 = vector.extract_strided_slice %59 {offsets = [0, 32], sizes = [2, 32], strides = [1, 1]} : vector<2x96xf32> to vector<2x32xf32>
      %72 = vector.extract_strided_slice %62 {offsets = [0, 32], sizes = [2, 32], strides = [1, 1]} : vector<2x96xf32> to vector<2x32xf32>
      %73 = arith.addf %71, %72 : vector<2x32xf32>
      %74 = arith.negf %73 : vector<2x32xf32>
      %75 = math.exp %74 : vector<2x32xf32>
      %cst_43 = arith.constant 1.000000e+00 : f32
      %76 = vector.broadcast %cst_43 : f32 to vector<2x32xf32>
      %77 = arith.addf %76, %75 : vector<2x32xf32>
      %78 = arith.divf %76, %77 : vector<2x32xf32>
      %79 = vector.extract_strided_slice %59 {offsets = [0, 64], sizes = [2, 32], strides = [1, 1]} : vector<2x96xf32> to vector<2x32xf32>
      %80 = vector.extract_strided_slice %62 {offsets = [0, 64], sizes = [2, 32], strides = [1, 1]} : vector<2x96xf32> to vector<2x32xf32>
      %81 = arith.mulf %70, %80 : vector<2x32xf32>
      %82 = arith.addf %79, %81 : vector<2x32xf32>
      %83 = math.tanh %82 : vector<2x32xf32>
      %cst_44 = arith.constant 1.000000e+00 : f32
      %84 = vector.broadcast %cst_44 : f32 to vector<2x32xf32>
      %85 = arith.subf %84, %78 : vector<2x32xf32>
      %86 = arith.mulf %85, %83 : vector<2x32xf32>
      %87 = arith.mulf %78, %58 : vector<2x32xf32>
      %88 = arith.addf %86, %87 : vector<2x32xf32>
      %89 = vector.extract_strided_slice %88 {offsets = [0, 0], sizes = [1, 32], strides = [1, 1]} : vector<2x32xf32> to vector<1x32xf32>
      %c0_45 = arith.constant 0 : index
      %c0_46 = arith.constant 0 : index
      %90 = vector.load %arg14[%c0_45, %c0_46] : memref<16x32xf32, #tpu.memory_space<vmem>>, vector<1x32xf32>
      tpu.vector_store %arg14[%c0_45, %c0_46], %89 {strides = array<i32>} : memref<16x32xf32, #tpu.memory_space<vmem>>, vector<1x32xf32>,
      %91 = vector.extract_strided_slice %88 {offsets = [1, 0], sizes = [1, 32], strides = [1, 1]} : vector<2x32xf32> to vector<1x32xf32>
      %c8 = arith.constant 8 : index
      %c0_47 = arith.constant 0 : index
      %92 = vector.load %arg14[%c8, %c0_47] : memref<16x32xf32, #tpu.memory_space<vmem>>, vector<1x32xf32>
      tpu.vector_store %arg14[%c8, %c0_47], %91 {strides = array<i32>} : memref<16x32xf32, #tpu.memory_space<vmem>>, vector<1x32xf32>,
      %93 = vector.extract_strided_slice %55 {offsets = [2, 0], sizes = [2, 96], strides = [1, 1]} : vector<16x96xf32> to vector<2x96xf32>
      %cst_48 = arith.constant dense<0.000000e+00> : vector<2x96xf32>
      %94 = tpu.matmul %88, %56, %cst_48 {dimension_numbers = #tpu.dot_dimension_numbers<[1], [0], [0], [1], [0, 0, 1, 1], [], []>} : vector<2x32xf32>, vector<32x96xf32>, vector<2x96xf32> -> vector<2x96xf32>
      %95 = vector.broadcast %57 : vector<1x96xf32> to vector<2x96xf32>
      %96 = arith.addf %94, %95 : vector<2x96xf32>
      %97 = vector.extract_strided_slice %93 {offsets = [0, 0], sizes = [2, 32], strides = [1, 1]} : vector<2x96xf32> to vector<2x32xf32>
      %98 = vector.extract_strided_slice %96 {offsets = [0, 0], sizes = [2, 32], strides = [1, 1]} : vector<2x96xf32> to vector<2x32xf32>
      %99 = arith.addf %97, %98 : vector<2x32xf32>
      %100 = arith.negf %99 : vector<2x32xf32>
      %101 = math.exp %100 : vector<2x32xf32>
      %cst_49 = arith.constant 1.000000e+00 : f32
      %102 = vector.broadcast %cst_49 : f32 to vector<2x32xf32>
      %103 = arith.addf %102, %101 : vector<2x32xf32>
      %104 = arith.divf %102, %103 : vector<2x32xf32>
      %105 = vector.extract_strided_slice %93 {offsets = [0, 32], sizes = [2, 32], strides = [1, 1]} : vector<2x96xf32> to vector<2x32xf32>
      %106 = vector.extract_strided_slice %96 {offsets = [0, 32], sizes = [2, 32], strides = [1, 1]} : vector<2x96xf32> to vector<2x32xf32>
      %107 = arith.addf %105, %106 : vector<2x32xf32>
      %108 = arith.negf %107 : vector<2x32xf32>
      %109 = math.exp %108 : vector<2x32xf32>
      %cst_50 = arith.constant 1.000000e+00 : f32
      %110 = vector.broadcast %cst_50 : f32 to vector<2x32xf32>
      %111 = arith.addf %110, %109 : vector<2x32xf32>
      %112 = arith.divf %110, %111 : vector<2x32xf32>
      %113 = vector.extract_strided_slice %93 {offsets = [0, 64], sizes = [2, 32], strides = [1, 1]} : vector<2x96xf32> to vector<2x32xf32>
      %114 = vector.extract_strided_slice %96 {offsets = [0, 64], sizes = [2, 32], strides = [1, 1]} : vector<2x96xf32> to vector<2x32xf32>
      %115 = arith.mulf %104, %114 : vector<2x32xf32>
      %116 = arith.addf %113, %115 : vector<2x32xf32>
      %117 = math.tanh %116 : vector<2x32xf32>
      %cst_51 = arith.constant 1.000000e+00 : f32
      %118 = vector.broadcast %cst_51 : f32 to vector<2x32xf32>
      %119 = arith.subf %118, %112 : vector<2x32xf32>
      %120 = arith.mulf %119, %117 : vector<2x32xf32>
      %121 = arith.mulf %112, %88 : vector<2x32xf32>
      %122 = arith.addf %120, %121 : vector<2x32xf32>
      %123 = vector.extract_strided_slice %122 {offsets = [0, 0], sizes = [1, 32], strides = [1, 1]} : vector<2x32xf32> to vector<1x32xf32>
      %c1 = arith.constant 1 : index
      %c0_52 = arith.constant 0 : index
      %124 = vector.load %arg14[%c1, %c0_52] : memref<16x32xf32, #tpu.memory_space<vmem>>, vector<1x32xf32>
      tpu.vector_store %arg14[%c1, %c0_52], %123 {strides = array<i32>} : memref<16x32xf32, #tpu.memory_space<vmem>>, vector<1x32xf32>,
      %125 = vector.extract_strided_slice %122 {offsets = [1, 0], sizes = [1, 32], strides = [1, 1]} : vector<2x32xf32> to vector<1x32xf32>
      %c9 = arith.constant 9 : index
      %c0_53 = arith.constant 0 : index
      %126 = vector.load %arg14[%c9, %c0_53] : memref<16x32xf32, #tpu.memory_space<vmem>>, vector<1x32xf32>
      tpu.vector_store %arg14[%c9, %c0_53], %125 {strides = array<i32>} : memref<16x32xf32, #tpu.memory_space<vmem>>, vector<1x32xf32>,
      %127 = vector.extract_strided_slice %55 {offsets = [4, 0], sizes = [2, 96], strides = [1, 1]} : vector<16x96xf32> to vector<2x96xf32>
      %cst_54 = arith.constant dense<0.000000e+00> : vector<2x96xf32>
      %128 = tpu.matmul %122, %56, %cst_54 {dimension_numbers = #tpu.dot_dimension_numbers<[1], [0], [0], [1], [0, 0, 1, 1], [], []>} : vector<2x32xf32>, vector<32x96xf32>, vector<2x96xf32> -> vector<2x96xf32>
      %129 = vector.broadcast %57 : vector<1x96xf32> to vector<2x96xf32>
      %130 = arith.addf %128, %129 : vector<2x96xf32>
      %131 = vector.extract_strided_slice %127 {offsets = [0, 0], sizes = [2, 32], strides = [1, 1]} : vector<2x96xf32> to vector<2x32xf32>
      %132 = vector.extract_strided_slice %130 {offsets = [0, 0], sizes = [2, 32], strides = [1, 1]} : vector<2x96xf32> to vector<2x32xf32>
      %133 = arith.addf %131, %132 : vector<2x32xf32>
      %134 = arith.negf %133 : vector<2x32xf32>
      %135 = math.exp %134 : vector<2x32xf32>
      %cst_55 = arith.constant 1.000000e+00 : f32
      %136 = vector.broadcast %cst_55 : f32 to vector<2x32xf32>
      %137 = arith.addf %136, %135 : vector<2x32xf32>
      %138 = arith.divf %136, %137 : vector<2x32xf32>
      %139 = vector.extract_strided_slice %127 {offsets = [0, 32], sizes = [2, 32], strides = [1, 1]} : vector<2x96xf32> to vector<2x32xf32>
      %140 = vector.extract_strided_slice %130 {offsets = [0, 32], sizes = [2, 32], strides = [1, 1]} : vector<2x96xf32> to vector<2x32xf32>
      %141 = arith.addf %139, %140 : vector<2x32xf32>
      %142 = arith.negf %141 : vector<2x32xf32>
      %143 = math.exp %142 : vector<2x32xf32>
      %cst_56 = arith.constant 1.000000e+00 : f32
      %144 = vector.broadcast %cst_56 : f32 to vector<2x32xf32>
      %145 = arith.addf %144, %143 : vector<2x32xf32>
      %146 = arith.divf %144, %145 : vector<2x32xf32>
      %147 = vector.extract_strided_slice %127 {offsets = [0, 64], sizes = [2, 32], strides = [1, 1]} : vector<2x96xf32> to vector<2x32xf32>
      %148 = vector.extract_strided_slice %130 {offsets = [0, 64], sizes = [2, 32], strides = [1, 1]} : vector<2x96xf32> to vector<2x32xf32>
      %149 = arith.mulf %138, %148 : vector<2x32xf32>
      %150 = arith.addf %147, %149 : vector<2x32xf32>
      %151 = math.tanh %150 : vector<2x32xf32>
      %cst_57 = arith.constant 1.000000e+00 : f32
      %152 = vector.broadcast %cst_57 : f32 to vector<2x32xf32>
      %153 = arith.subf %152, %146 : vector<2x32xf32>
      %154 = arith.mulf %153, %151 : vector<2x32xf32>
      %155 = arith.mulf %146, %122 : vector<2x32xf32>
      %156 = arith.addf %154, %155 : vector<2x32xf32>
      %157 = vector.extract_strided_slice %156 {offsets = [0, 0], sizes = [1, 32], strides = [1, 1]} : vector<2x32xf32> to vector<1x32xf32>
      %c2 = arith.constant 2 : index
      %c0_58 = arith.constant 0 : index
      %158 = vector.load %arg14[%c2, %c0_58] : memref<16x32xf32, #tpu.memory_space<vmem>>, vector<1x32xf32>
      tpu.vector_store %arg14[%c2, %c0_58], %157 {strides = array<i32>} : memref<16x32xf32, #tpu.memory_space<vmem>>, vector<1x32xf32>,
      %159 = vector.extract_strided_slice %156 {offsets = [1, 0], sizes = [1, 32], strides = [1, 1]} : vector<2x32xf32> to vector<1x32xf32>
      %c10 = arith.constant 10 : index
      %c0_59 = arith.constant 0 : index
      %160 = vector.load %arg14[%c10, %c0_59] : memref<16x32xf32, #tpu.memory_space<vmem>>, vector<1x32xf32>
      tpu.vector_store %arg14[%c10, %c0_59], %159 {strides = array<i32>} : memref<16x32xf32, #tpu.memory_space<vmem>>, vector<1x32xf32>,
      %161 = vector.extract_strided_slice %55 {offsets = [6, 0], sizes = [2, 96], strides = [1, 1]} : vector<16x96xf32> to vector<2x96xf32>
      %cst_60 = arith.constant dense<0.000000e+00> : vector<2x96xf32>
      %162 = tpu.matmul %156, %56, %cst_60 {dimension_numbers = #tpu.dot_dimension_numbers<[1], [0], [0], [1], [0, 0, 1, 1], [], []>} : vector<2x32xf32>, vector<32x96xf32>, vector<2x96xf32> -> vector<2x96xf32>
      %163 = vector.broadcast %57 : vector<1x96xf32> to vector<2x96xf32>
      %164 = arith.addf %162, %163 : vector<2x96xf32>
      %165 = vector.extract_strided_slice %161 {offsets = [0, 0], sizes = [2, 32], strides = [1, 1]} : vector<2x96xf32> to vector<2x32xf32>
      %166 = vector.extract_strided_slice %164 {offsets = [0, 0], sizes = [2, 32], strides = [1, 1]} : vector<2x96xf32> to vector<2x32xf32>
      %167 = arith.addf %165, %166 : vector<2x32xf32>
      %168 = arith.negf %167 : vector<2x32xf32>
      %169 = math.exp %168 : vector<2x32xf32>
      %cst_61 = arith.constant 1.000000e+00 : f32
      %170 = vector.broadcast %cst_61 : f32 to vector<2x32xf32>
      %171 = arith.addf %170, %169 : vector<2x32xf32>
      %172 = arith.divf %170, %171 : vector<2x32xf32>
      %173 = vector.extract_strided_slice %161 {offsets = [0, 32], sizes = [2, 32], strides = [1, 1]} : vector<2x96xf32> to vector<2x32xf32>
      %174 = vector.extract_strided_slice %164 {offsets = [0, 32], sizes = [2, 32], strides = [1, 1]} : vector<2x96xf32> to vector<2x32xf32>
      %175 = arith.addf %173, %174 : vector<2x32xf32>
      %176 = arith.negf %175 : vector<2x32xf32>
      %177 = math.exp %176 : vector<2x32xf32>
      %cst_62 = arith.constant 1.000000e+00 : f32
      %178 = vector.broadcast %cst_62 : f32 to vector<2x32xf32>
      %179 = arith.addf %178, %177 : vector<2x32xf32>
      %180 = arith.divf %178, %179 : vector<2x32xf32>
      %181 = vector.extract_strided_slice %161 {offsets = [0, 64], sizes = [2, 32], strides = [1, 1]} : vector<2x96xf32> to vector<2x32xf32>
      %182 = vector.extract_strided_slice %164 {offsets = [0, 64], sizes = [2, 32], strides = [1, 1]} : vector<2x96xf32> to vector<2x32xf32>
      %183 = arith.mulf %172, %182 : vector<2x32xf32>
      %184 = arith.addf %181, %183 : vector<2x32xf32>
      %185 = math.tanh %184 : vector<2x32xf32>
      %cst_63 = arith.constant 1.000000e+00 : f32
      %186 = vector.broadcast %cst_63 : f32 to vector<2x32xf32>
      %187 = arith.subf %186, %180 : vector<2x32xf32>
      %188 = arith.mulf %187, %185 : vector<2x32xf32>
      %189 = arith.mulf %180, %156 : vector<2x32xf32>
      %190 = arith.addf %188, %189 : vector<2x32xf32>
      %191 = vector.extract_strided_slice %190 {offsets = [0, 0], sizes = [1, 32], strides = [1, 1]} : vector<2x32xf32> to vector<1x32xf32>
      %c3 = arith.constant 3 : index
      %c0_64 = arith.constant 0 : index
      %192 = vector.load %arg14[%c3, %c0_64] : memref<16x32xf32, #tpu.memory_space<vmem>>, vector<1x32xf32>
      tpu.vector_store %arg14[%c3, %c0_64], %191 {strides = array<i32>} : memref<16x32xf32, #tpu.memory_space<vmem>>, vector<1x32xf32>,
      %193 = vector.extract_strided_slice %190 {offsets = [1, 0], sizes = [1, 32], strides = [1, 1]} : vector<2x32xf32> to vector<1x32xf32>
      %c11 = arith.constant 11 : index
      %c0_65 = arith.constant 0 : index
      %194 = vector.load %arg14[%c11, %c0_65] : memref<16x32xf32, #tpu.memory_space<vmem>>, vector<1x32xf32>
      tpu.vector_store %arg14[%c11, %c0_65], %193 {strides = array<i32>} : memref<16x32xf32, #tpu.memory_space<vmem>>, vector<1x32xf32>,
      %195 = vector.extract_strided_slice %55 {offsets = [8, 0], sizes = [2, 96], strides = [1, 1]} : vector<16x96xf32> to vector<2x96xf32>
      %cst_66 = arith.constant dense<0.000000e+00> : vector<2x96xf32>
      %196 = tpu.matmul %190, %56, %cst_66 {dimension_numbers = #tpu.dot_dimension_numbers<[1], [0], [0], [1], [0, 0, 1, 1], [], []>} : vector<2x32xf32>, vector<32x96xf32>, vector<2x96xf32> -> vector<2x96xf32>
      %197 = vector.broadcast %57 : vector<1x96xf32> to vector<2x96xf32>
      %198 = arith.addf %196, %197 : vector<2x96xf32>
      %199 = vector.extract_strided_slice %195 {offsets = [0, 0], sizes = [2, 32], strides = [1, 1]} : vector<2x96xf32> to vector<2x32xf32>
      %200 = vector.extract_strided_slice %198 {offsets = [0, 0], sizes = [2, 32], strides = [1, 1]} : vector<2x96xf32> to vector<2x32xf32>
      %201 = arith.addf %199, %200 : vector<2x32xf32>
      %202 = arith.negf %201 : vector<2x32xf32>
      %203 = math.exp %202 : vector<2x32xf32>
      %cst_67 = arith.constant 1.000000e+00 : f32
      %204 = vector.broadcast %cst_67 : f32 to vector<2x32xf32>
      %205 = arith.addf %204, %203 : vector<2x32xf32>
      %206 = arith.divf %204, %205 : vector<2x32xf32>
      %207 = vector.extract_strided_slice %195 {offsets = [0, 32], sizes = [2, 32], strides = [1, 1]} : vector<2x96xf32> to vector<2x32xf32>
      %208 = vector.extract_strided_slice %198 {offsets = [0, 32], sizes = [2, 32], strides = [1, 1]} : vector<2x96xf32> to vector<2x32xf32>
      %209 = arith.addf %207, %208 : vector<2x32xf32>
      %210 = arith.negf %209 : vector<2x32xf32>
      %211 = math.exp %210 : vector<2x32xf32>
      %cst_68 = arith.constant 1.000000e+00 : f32
      %212 = vector.broadcast %cst_68 : f32 to vector<2x32xf32>
      %213 = arith.addf %212, %211 : vector<2x32xf32>
      %214 = arith.divf %212, %213 : vector<2x32xf32>
      %215 = vector.extract_strided_slice %195 {offsets = [0, 64], sizes = [2, 32], strides = [1, 1]} : vector<2x96xf32> to vector<2x32xf32>
      %216 = vector.extract_strided_slice %198 {offsets = [0, 64], sizes = [2, 32], strides = [1, 1]} : vector<2x96xf32> to vector<2x32xf32>
      %217 = arith.mulf %206, %216 : vector<2x32xf32>
      %218 = arith.addf %215, %217 : vector<2x32xf32>
      %219 = math.tanh %218 : vector<2x32xf32>
      %cst_69 = arith.constant 1.000000e+00 : f32
      %220 = vector.broadcast %cst_69 : f32 to vector<2x32xf32>
      %221 = arith.subf %220, %214 : vector<2x32xf32>
      %222 = arith.mulf %221, %219 : vector<2x32xf32>
      %223 = arith.mulf %214, %190 : vector<2x32xf32>
      %224 = arith.addf %222, %223 : vector<2x32xf32>
      %225 = vector.extract_strided_slice %224 {offsets = [0, 0], sizes = [1, 32], strides = [1, 1]} : vector<2x32xf32> to vector<1x32xf32>
      %c4 = arith.constant 4 : index
      %c0_70 = arith.constant 0 : index
      %226 = vector.load %arg14[%c4, %c0_70] : memref<16x32xf32, #tpu.memory_space<vmem>>, vector<1x32xf32>
      tpu.vector_store %arg14[%c4, %c0_70], %225 {strides = array<i32>} : memref<16x32xf32, #tpu.memory_space<vmem>>, vector<1x32xf32>,
      %227 = vector.extract_strided_slice %224 {offsets = [1, 0], sizes = [1, 32], strides = [1, 1]} : vector<2x32xf32> to vector<1x32xf32>
      %c12 = arith.constant 12 : index
      %c0_71 = arith.constant 0 : index
      %228 = vector.load %arg14[%c12, %c0_71] : memref<16x32xf32, #tpu.memory_space<vmem>>, vector<1x32xf32>
      tpu.vector_store %arg14[%c12, %c0_71], %227 {strides = array<i32>} : memref<16x32xf32, #tpu.memory_space<vmem>>, vector<1x32xf32>,
      %229 = vector.extract_strided_slice %55 {offsets = [10, 0], sizes = [2, 96], strides = [1, 1]} : vector<16x96xf32> to vector<2x96xf32>
      %cst_72 = arith.constant dense<0.000000e+00> : vector<2x96xf32>
      %230 = tpu.matmul %224, %56, %cst_72 {dimension_numbers = #tpu.dot_dimension_numbers<[1], [0], [0], [1], [0, 0, 1, 1], [], []>} : vector<2x32xf32>, vector<32x96xf32>, vector<2x96xf32> -> vector<2x96xf32>
      %231 = vector.broadcast %57 : vector<1x96xf32> to vector<2x96xf32>
      %232 = arith.addf %230, %231 : vector<2x96xf32>
      %233 = vector.extract_strided_slice %229 {offsets = [0, 0], sizes = [2, 32], strides = [1, 1]} : vector<2x96xf32> to vector<2x32xf32>
      %234 = vector.extract_strided_slice %232 {offsets = [0, 0], sizes = [2, 32], strides = [1, 1]} : vector<2x96xf32> to vector<2x32xf32>
      %235 = arith.addf %233, %234 : vector<2x32xf32>
      %236 = arith.negf %235 : vector<2x32xf32>
      %237 = math.exp %236 : vector<2x32xf32>
      %cst_73 = arith.constant 1.000000e+00 : f32
      %238 = vector.broadcast %cst_73 : f32 to vector<2x32xf32>
      %239 = arith.addf %238, %237 : vector<2x32xf32>
      %240 = arith.divf %238, %239 : vector<2x32xf32>
      %241 = vector.extract_strided_slice %229 {offsets = [0, 32], sizes = [2, 32], strides = [1, 1]} : vector<2x96xf32> to vector<2x32xf32>
      %242 = vector.extract_strided_slice %232 {offsets = [0, 32], sizes = [2, 32], strides = [1, 1]} : vector<2x96xf32> to vector<2x32xf32>
      %243 = arith.addf %241, %242 : vector<2x32xf32>
      %244 = arith.negf %243 : vector<2x32xf32>
      %245 = math.exp %244 : vector<2x32xf32>
      %cst_74 = arith.constant 1.000000e+00 : f32
      %246 = vector.broadcast %cst_74 : f32 to vector<2x32xf32>
      %247 = arith.addf %246, %245 : vector<2x32xf32>
      %248 = arith.divf %246, %247 : vector<2x32xf32>
      %249 = vector.extract_strided_slice %229 {offsets = [0, 64], sizes = [2, 32], strides = [1, 1]} : vector<2x96xf32> to vector<2x32xf32>
      %250 = vector.extract_strided_slice %232 {offsets = [0, 64], sizes = [2, 32], strides = [1, 1]} : vector<2x96xf32> to vector<2x32xf32>
      %251 = arith.mulf %240, %250 : vector<2x32xf32>
      %252 = arith.addf %249, %251 : vector<2x32xf32>
      %253 = math.tanh %252 : vector<2x32xf32>
      %cst_75 = arith.constant 1.000000e+00 : f32
      %254 = vector.broadcast %cst_75 : f32 to vector<2x32xf32>
      %255 = arith.subf %254, %248 : vector<2x32xf32>
      %256 = arith.mulf %255, %253 : vector<2x32xf32>
      %257 = arith.mulf %248, %224 : vector<2x32xf32>
      %258 = arith.addf %256, %257 : vector<2x32xf32>
      %259 = vector.extract_strided_slice %258 {offsets = [0, 0], sizes = [1, 32], strides = [1, 1]} : vector<2x32xf32> to vector<1x32xf32>
      %c5 = arith.constant 5 : index
      %c0_76 = arith.constant 0 : index
      %260 = vector.load %arg14[%c5, %c0_76] : memref<16x32xf32, #tpu.memory_space<vmem>>, vector<1x32xf32>
      tpu.vector_store %arg14[%c5, %c0_76], %259 {strides = array<i32>} : memref<16x32xf32, #tpu.memory_space<vmem>>, vector<1x32xf32>,
      %261 = vector.extract_strided_slice %258 {offsets = [1, 0], sizes = [1, 32], strides = [1, 1]} : vector<2x32xf32> to vector<1x32xf32>
      %c13 = arith.constant 13 : index
      %c0_77 = arith.constant 0 : index
      %262 = vector.load %arg14[%c13, %c0_77] : memref<16x32xf32, #tpu.memory_space<vmem>>, vector<1x32xf32>
      tpu.vector_store %arg14[%c13, %c0_77], %261 {strides = array<i32>} : memref<16x32xf32, #tpu.memory_space<vmem>>, vector<1x32xf32>,
      %263 = vector.extract_strided_slice %55 {offsets = [12, 0], sizes = [2, 96], strides = [1, 1]} : vector<16x96xf32> to vector<2x96xf32>
      %cst_78 = arith.constant dense<0.000000e+00> : vector<2x96xf32>
      %264 = tpu.matmul %258, %56, %cst_78 {dimension_numbers = #tpu.dot_dimension_numbers<[1], [0], [0], [1], [0, 0, 1, 1], [], []>} : vector<2x32xf32>, vector<32x96xf32>, vector<2x96xf32> -> vector<2x96xf32>
      %265 = vector.broadcast %57 : vector<1x96xf32> to vector<2x96xf32>
      %266 = arith.addf %264, %265 : vector<2x96xf32>
      %267 = vector.extract_strided_slice %263 {offsets = [0, 0], sizes = [2, 32], strides = [1, 1]} : vector<2x96xf32> to vector<2x32xf32>
      %268 = vector.extract_strided_slice %266 {offsets = [0, 0], sizes = [2, 32], strides = [1, 1]} : vector<2x96xf32> to vector<2x32xf32>
      %269 = arith.addf %267, %268 : vector<2x32xf32>
      %270 = arith.negf %269 : vector<2x32xf32>
      %271 = math.exp %270 : vector<2x32xf32>
      %cst_79 = arith.constant 1.000000e+00 : f32
      %272 = vector.broadcast %cst_79 : f32 to vector<2x32xf32>
      %273 = arith.addf %272, %271 : vector<2x32xf32>
      %274 = arith.divf %272, %273 : vector<2x32xf32>
      %275 = vector.extract_strided_slice %263 {offsets = [0, 32], sizes = [2, 32], strides = [1, 1]} : vector<2x96xf32> to vector<2x32xf32>
      %276 = vector.extract_strided_slice %266 {offsets = [0, 32], sizes = [2, 32], strides = [1, 1]} : vector<2x96xf32> to vector<2x32xf32>
      %277 = arith.addf %275, %276 : vector<2x32xf32>
      %278 = arith.negf %277 : vector<2x32xf32>
      %279 = math.exp %278 : vector<2x32xf32>
      %cst_80 = arith.constant 1.000000e+00 : f32
      %280 = vector.broadcast %cst_80 : f32 to vector<2x32xf32>
      %281 = arith.addf %280, %279 : vector<2x32xf32>
      %282 = arith.divf %280, %281 : vector<2x32xf32>
      %283 = vector.extract_strided_slice %263 {offsets = [0, 64], sizes = [2, 32], strides = [1, 1]} : vector<2x96xf32> to vector<2x32xf32>
      %284 = vector.extract_strided_slice %266 {offsets = [0, 64], sizes = [2, 32], strides = [1, 1]} : vector<2x96xf32> to vector<2x32xf32>
      %285 = arith.mulf %274, %284 : vector<2x32xf32>
      %286 = arith.addf %283, %285 : vector<2x32xf32>
      %287 = math.tanh %286 : vector<2x32xf32>
      %cst_81 = arith.constant 1.000000e+00 : f32
      %288 = vector.broadcast %cst_81 : f32 to vector<2x32xf32>
      %289 = arith.subf %288, %282 : vector<2x32xf32>
      %290 = arith.mulf %289, %287 : vector<2x32xf32>
      %291 = arith.mulf %282, %258 : vector<2x32xf32>
      %292 = arith.addf %290, %291 : vector<2x32xf32>
      %293 = vector.extract_strided_slice %292 {offsets = [0, 0], sizes = [1, 32], strides = [1, 1]} : vector<2x32xf32> to vector<1x32xf32>
      %c6 = arith.constant 6 : index
      %c0_82 = arith.constant 0 : index
      %294 = vector.load %arg14[%c6, %c0_82] : memref<16x32xf32, #tpu.memory_space<vmem>>, vector<1x32xf32>
      tpu.vector_store %arg14[%c6, %c0_82], %293 {strides = array<i32>} : memref<16x32xf32, #tpu.memory_space<vmem>>, vector<1x32xf32>,
      %295 = vector.extract_strided_slice %292 {offsets = [1, 0], sizes = [1, 32], strides = [1, 1]} : vector<2x32xf32> to vector<1x32xf32>
      %c14 = arith.constant 14 : index
      %c0_83 = arith.constant 0 : index
      %296 = vector.load %arg14[%c14, %c0_83] : memref<16x32xf32, #tpu.memory_space<vmem>>, vector<1x32xf32>
      tpu.vector_store %arg14[%c14, %c0_83], %295 {strides = array<i32>} : memref<16x32xf32, #tpu.memory_space<vmem>>, vector<1x32xf32>,
      %297 = vector.extract_strided_slice %55 {offsets = [14, 0], sizes = [2, 96], strides = [1, 1]} : vector<16x96xf32> to vector<2x96xf32>
      %cst_84 = arith.constant dense<0.000000e+00> : vector<2x96xf32>
      %298 = tpu.matmul %292, %56, %cst_84 {dimension_numbers = #tpu.dot_dimension_numbers<[1], [0], [0], [1], [0, 0, 1, 1], [], []>} : vector<2x32xf32>, vector<32x96xf32>, vector<2x96xf32> -> vector<2x96xf32>
      %299 = vector.broadcast %57 : vector<1x96xf32> to vector<2x96xf32>
      %300 = arith.addf %298, %299 : vector<2x96xf32>
      %301 = vector.extract_strided_slice %297 {offsets = [0, 0], sizes = [2, 32], strides = [1, 1]} : vector<2x96xf32> to vector<2x32xf32>
      %302 = vector.extract_strided_slice %300 {offsets = [0, 0], sizes = [2, 32], strides = [1, 1]} : vector<2x96xf32> to vector<2x32xf32>
      %303 = arith.addf %301, %302 : vector<2x32xf32>
      %304 = arith.negf %303 : vector<2x32xf32>
      %305 = math.exp %304 : vector<2x32xf32>
      %cst_85 = arith.constant 1.000000e+00 : f32
      %306 = vector.broadcast %cst_85 : f32 to vector<2x32xf32>
      %307 = arith.addf %306, %305 : vector<2x32xf32>
      %308 = arith.divf %306, %307 : vector<2x32xf32>
      %309 = vector.extract_strided_slice %297 {offsets = [0, 32], sizes = [2, 32], strides = [1, 1]} : vector<2x96xf32> to vector<2x32xf32>
      %310 = vector.extract_strided_slice %300 {offsets = [0, 32], sizes = [2, 32], strides = [1, 1]} : vector<2x96xf32> to vector<2x32xf32>
      %311 = arith.addf %309, %310 : vector<2x32xf32>
      %312 = arith.negf %311 : vector<2x32xf32>
      %313 = math.exp %312 : vector<2x32xf32>
      %cst_86 = arith.constant 1.000000e+00 : f32
      %314 = vector.broadcast %cst_86 : f32 to vector<2x32xf32>
      %315 = arith.addf %314, %313 : vector<2x32xf32>
      %316 = arith.divf %314, %315 : vector<2x32xf32>
      %317 = vector.extract_strided_slice %297 {offsets = [0, 64], sizes = [2, 32], strides = [1, 1]} : vector<2x96xf32> to vector<2x32xf32>
      %318 = vector.extract_strided_slice %300 {offsets = [0, 64], sizes = [2, 32], strides = [1, 1]} : vector<2x96xf32> to vector<2x32xf32>
      %319 = arith.mulf %308, %318 : vector<2x32xf32>
      %320 = arith.addf %317, %319 : vector<2x32xf32>
      %321 = math.tanh %320 : vector<2x32xf32>
      %cst_87 = arith.constant 1.000000e+00 : f32
      %322 = vector.broadcast %cst_87 : f32 to vector<2x32xf32>
      %323 = arith.subf %322, %316 : vector<2x32xf32>
      %324 = arith.mulf %323, %321 : vector<2x32xf32>
      %325 = arith.mulf %316, %292 : vector<2x32xf32>
      %326 = arith.addf %324, %325 : vector<2x32xf32>
      %327 = vector.extract_strided_slice %326 {offsets = [0, 0], sizes = [1, 32], strides = [1, 1]} : vector<2x32xf32> to vector<1x32xf32>
      %c7 = arith.constant 7 : index
      %c0_88 = arith.constant 0 : index
      %328 = vector.load %arg14[%c7, %c0_88] : memref<16x32xf32, #tpu.memory_space<vmem>>, vector<1x32xf32>
      tpu.vector_store %arg14[%c7, %c0_88], %327 {strides = array<i32>} : memref<16x32xf32, #tpu.memory_space<vmem>>, vector<1x32xf32>,
      %329 = vector.extract_strided_slice %326 {offsets = [1, 0], sizes = [1, 32], strides = [1, 1]} : vector<2x32xf32> to vector<1x32xf32>
      %c15 = arith.constant 15 : index
      %c0_89 = arith.constant 0 : index
      %330 = vector.load %arg14[%c15, %c0_89] : memref<16x32xf32, #tpu.memory_space<vmem>>, vector<1x32xf32>
      tpu.vector_store %arg14[%c15, %c0_89], %329 {strides = array<i32>} : memref<16x32xf32, #tpu.memory_space<vmem>>, vector<1x32xf32>,
      %c0_90 = arith.constant 0 : index
      %c0_91 = arith.constant 0 : index
      %331 = vector.load %arg13[%c0_90, %c0_91] : memref<2x32xf32, #tpu.memory_space<vmem>>, vector<2x32xf32>
      tpu.vector_store %arg13[%c0_90, %c0_91], %326 {strides = array<i32>} : memref<2x32xf32, #tpu.memory_space<vmem>>, vector<2x32xf32>,
    } else {
    }
    %c8_i32 = arith.constant 8 : i32
    %3 = arith.muli %arg0, %c8_i32 : i32
    %4 = tpu.assume_multiple %3, 8 : i32
    %5 = arith.index_cast %4 : i32 to index
    %c0 = arith.constant 0 : index
    %6 = vector.load %arg14[%5, %c0] : memref<16x32xf32, #tpu.memory_space<vmem>>, vector<8x32xf32>
    %c0_1 = arith.constant 0 : index
    %c0_2 = arith.constant 0 : index
    %c0_3 = arith.constant 0 : index
    %7 = vector.load %arg7[%c0_1, %c0_2, %c0_3] : memref<1x12x48xf32, #tpu.memory_space<vmem>>, vector<1x12x48xf32>
    %8 = vector.shape_cast %7 : vector<1x12x48xf32> to vector<12x48xf32>
    %c0_4 = arith.constant 0 : index
    %c0_5 = arith.constant 0 : index
    %c0_6 = arith.constant 0 : index
    %9 = vector.load %arg8[%c0_4, %c0_5, %c0_6] : memref<1x1x12xf32, #tpu.memory_space<vmem>>, vector<1x1x12xf32>
    %10 = vector.shape_cast %9 : vector<1x1x12xf32> to vector<1x12xf32>
    %c0_7 = arith.constant 0 : index
    %c0_8 = arith.constant 0 : index
    %11 = vector.load %arg9[%c0_7, %c0_8] : memref<48x64xf32, #tpu.memory_space<vmem>>, vector<48x64xf32>
    %cst = arith.constant dense<0.000000e+00> : vector<12x64xf32>
    %12 = tpu.matmul %8, %11, %cst {dimension_numbers = #tpu.dot_dimension_numbers<[1], [0], [0], [1], [0, 0, 1, 1], [], []>} : vector<12x48xf32>, vector<48x64xf32>, vector<12x64xf32> -> vector<12x64xf32>
    %13 = vector.extract_strided_slice %12 {offsets = [0, 0], sizes = [12, 32], strides = [1, 1]} : vector<12x64xf32> to vector<12x32xf32>
    %14 = vector.extract_strided_slice %12 {offsets = [0, 32], sizes = [12, 32], strides = [1, 1]} : vector<12x64xf32> to vector<12x32xf32>
    %cst_9 = arith.constant dense<0.000000e+00> : vector<8x12xf32>
    %15 = tpu.matmul %6, %13, %cst_9 {dimension_numbers = #tpu.dot_dimension_numbers<[1], [1], [0], [0], [0, 0, 1, 0], [], []>} : vector<8x32xf32>, vector<12x32xf32>, vector<8x12xf32> -> vector<8x12xf32>
    %cst_10 = arith.constant 5.000000e-01 : f32
    %16 = vector.broadcast %cst_10 : f32 to vector<1x12xf32>
    %17 = arith.cmpf ogt, %10, %16 : vector<1x12xf32>
    %cst_11 = arith.constant 0xFF800000 : f32
    %18 = vector.shape_cast %17 : vector<1x12xi1> to vector<1x12xi1>
    %19 = vector.broadcast %18 : vector<1x12xi1> to vector<8x12xi1>
    %20 = vector.broadcast %cst_11 : f32 to vector<8x12xf32>
    %21 = arith.select %19, %20, %15 : vector<8x12xi1>, vector<8x12xf32>
    %cst_12 = arith.constant dense<0xFF800000> : vector<8xf32>
    %22 = vector.multi_reduction <maximumf>, %21, %cst_12 [1] : vector<8x12xf32> to vector<8xf32>
    %23 = vector.shape_cast %22 : vector<8xf32> to vector<8x1xf32>
    %24 = vector.broadcast %23 : vector<8x1xf32> to vector<8x12xf32>
    %25 = arith.subf %21, %24 : vector<8x12xf32>
    %26 = math.exp %25 : vector<8x12xf32>
    %cst_13 = arith.constant dense<0.000000e+00> : vector<8xf32>
    %27 = vector.multi_reduction <add>, %26, %cst_13 [1] : vector<8x12xf32> to vector<8xf32>
    %28 = vector.shape_cast %27 : vector<8xf32> to vector<8x1xf32>
    %29 = vector.broadcast %28 : vector<8x1xf32> to vector<8x12xf32>
    %30 = arith.divf %26, %29 : vector<8x12xf32>
    %cst_14 = arith.constant dense<0.000000e+00> : vector<8x48xf32>
    %31 = tpu.matmul %30, %8, %cst_14 {dimension_numbers = #tpu.dot_dimension_numbers<[1], [0], [0], [1], [0, 0, 1, 1], [], []>} : vector<8x12xf32>, vector<12x48xf32>, vector<8x48xf32> -> vector<8x48xf32>
    %32 = tpu.concatenate %31, %6 in 1 : vector<8x48xf32>, vector<8x32xf32> -> vector<8x80xf32>
    %c0_15 = arith.constant 0 : index
    %c0_16 = arith.constant 0 : index
    %33 = vector.load %arg10[%c0_15, %c0_16] : memref<80x32xf32, #tpu.memory_space<vmem>>, vector<80x32xf32>
    %cst_17 = arith.constant dense<0.000000e+00> : vector<8x32xf32>
    %34 = tpu.matmul %32, %33, %cst_17 {dimension_numbers = #tpu.dot_dimension_numbers<[1], [0], [0], [1], [0, 0, 1, 1], [], []>} : vector<8x80xf32>, vector<80x32xf32>, vector<8x32xf32> -> vector<8x32xf32>
    %35 = math.tanh %34 : vector<8x32xf32>
    %c0_18 = arith.constant 0 : index
    %c0_19 = arith.constant 0 : index
    %36 = vector.load %arg11[%c0_18, %c0_19] : memref<32x64xf32, #tpu.memory_space<vmem>>, vector<32x64xf32>
    %cst_20 = arith.constant dense<0.000000e+00> : vector<8x64xf32>
    %37 = tpu.matmul %35, %36, %cst_20 {dimension_numbers = #tpu.dot_dimension_numbers<[1], [0], [0], [1], [0, 0, 1, 1], [], []>} : vector<8x32xf32>, vector<32x64xf32>, vector<8x64xf32> -> vector<8x64xf32>
    %cst_21 = arith.constant dense<0.000000e+00> : vector<8x12xf32>
    %38 = tpu.matmul %35, %14, %cst_21 {dimension_numbers = #tpu.dot_dimension_numbers<[1], [1], [0], [0], [0, 0, 1, 0], [], []>} : vector<8x32xf32>, vector<12x32xf32>, vector<8x12xf32> -> vector<8x12xf32>
    %cst_22 = arith.constant 5.000000e-01 : f32
    %39 = vector.broadcast %cst_22 : f32 to vector<1x12xf32>
    %40 = arith.cmpf ogt, %10, %39 : vector<1x12xf32>
    %cst_23 = arith.constant 0xFF800000 : f32
    %41 = vector.shape_cast %40 : vector<1x12xi1> to vector<1x12xi1>
    %42 = vector.broadcast %41 : vector<1x12xi1> to vector<8x12xi1>
    %43 = vector.broadcast %cst_23 : f32 to vector<8x12xf32>
    %44 = arith.select %42, %43, %38 : vector<8x12xi1>, vector<8x12xf32>
    %cst_24 = arith.constant 0.000000e+00 : f32
    %45 = vector.broadcast %cst_24 : f32 to vector<8x20xf32>
    %46 = tpu.concatenate %35, %37, %44, %45 in 1 : vector<8x32xf32>, vector<8x64xf32>, vector<8x12xf32>, vector<8x20xf32> -> vector<8x128xf32>
    %c0_25 = arith.constant 0 : index
    %c0_26 = arith.constant 0 : index
    %c0_27 = arith.constant 0 : index
    %47 = vector.load %arg12[%c0_25, %c0_26, %c0_27] : memref<1x8x128xf32, #tpu.memory_space<vmem>>, vector<1x8x128xf32>
    %48 = vector.shape_cast %47 : vector<1x8x128xf32> to vector<8x128xf32>
    %49 = vector.shape_cast %46 : vector<8x128xf32> to vector<1x8x128xf32>
    tpu.vector_store %arg12[%c0_25, %c0_26, %c0_27], %49 {strides = array<i32>} : memref<1x8x128xf32, #tpu.memory_space<vmem>>, vector<1x8x128xf32>,
    return
  }
  func.func @transform_0(%arg0: i32) -> (i32, i32) {
    %c0_i32 = arith.constant 0 : i32
    %c0_i32_0 = arith.constant 0 : i32
    %c0_i32_1 = arith.constant 0 : i32
    return %c0_i32, %c0_i32_0 : i32, i32
  }
  func.func @transform_1(%arg0: i32) -> (i32, i32) {
    %c0_i32 = arith.constant 0 : i32
    %c0_i32_0 = arith.constant 0 : i32
    %c0_i32_1 = arith.constant 0 : i32
    return %c0_i32, %c0_i32_0 : i32, i32
  }
  func.func @transform_2(%arg0: i32) -> (i32, i32) {
    %c0_i32 = arith.constant 0 : i32
    %c0_i32_0 = arith.constant 0 : i32
    %c0_i32_1 = arith.constant 0 : i32
    return %c0_i32, %c0_i32_0 : i32, i32
  }
  func.func @transform_3(%arg0: i32) -> (i32, i32) {
    %c0_i32 = arith.constant 0 : i32
    %c0_i32_0 = arith.constant 0 : i32
    %c0_i32_1 = arith.constant 0 : i32
    return %c0_i32, %c0_i32_0 : i32, i32
  }
  func.func @transform_4(%arg0: i32) -> (i32, i32) {
    %c0_i32 = arith.constant 0 : i32
    %c0_i32_0 = arith.constant 0 : i32
    %c0_i32_1 = arith.constant 0 : i32
    return %c0_i32, %c0_i32_0 : i32, i32
  }
  func.func @transform_5(%arg0: i32) -> (i32, i32) {
    %c0_i32 = arith.constant 0 : i32
    %c0_i32_0 = arith.constant 0 : i32
    %c0_i32_1 = arith.constant 0 : i32
    return %c0_i32, %c0_i32_0 : i32, i32
  }
  func.func @transform_6(%arg0: i32) -> (i32, i32, i32) {
    %c0_i32 = arith.constant 0 : i32
    %c0_i32_0 = arith.constant 0 : i32
    %c0_i32_1 = arith.constant 0 : i32
    return %arg0, %c0_i32, %c0_i32_0 : i32, i32, i32
  }
  func.func @transform_7(%arg0: i32) -> (i32, i32, i32) {
    %c0_i32 = arith.constant 0 : i32
    %c0_i32_0 = arith.constant 0 : i32
    %c0_i32_1 = arith.constant 0 : i32
    return %arg0, %c0_i32, %c0_i32_0 : i32, i32, i32
  }
  func.func @transform_8(%arg0: i32) -> (i32, i32) {
    %c0_i32 = arith.constant 0 : i32
    %c0_i32_0 = arith.constant 0 : i32
    %c0_i32_1 = arith.constant 0 : i32
    return %c0_i32, %c0_i32_0 : i32, i32
  }
  func.func @transform_9(%arg0: i32) -> (i32, i32) {
    %c0_i32 = arith.constant 0 : i32
    %c0_i32_0 = arith.constant 0 : i32
    %c0_i32_1 = arith.constant 0 : i32
    return %c0_i32, %c0_i32_0 : i32, i32
  }
  func.func @transform_10(%arg0: i32) -> (i32, i32) {
    %c0_i32 = arith.constant 0 : i32
    %c0_i32_0 = arith.constant 0 : i32
    %c0_i32_1 = arith.constant 0 : i32
    return %c0_i32, %c0_i32_0 : i32, i32
  }
  func.func @transform_11(%arg0: i32) -> (i32, i32, i32) {
    %c0_i32 = arith.constant 0 : i32
    %c0_i32_0 = arith.constant 0 : i32
    %c0_i32_1 = arith.constant 0 : i32
    return %arg0, %c0_i32, %c0_i32_0 : i32, i32, i32
  }
  func.func @transform_12(%arg0: i32) -> (i32, i32) {
    %c0_i32 = arith.constant 0 : i32
    %c0_i32_0 = arith.constant 0 : i32
    %c0_i32_1 = arith.constant 0 : i32
    return %c0_i32, %c0_i32_0 : i32, i32
  }
}

</mosaic_0001>

<llo_original>
// kernel: decoder_forward.1
$region0: #{decoder_forward.1}
  #allocation0 [shape = 'u32[]', space=smem, size = 0x4, offset = 0x4, fixed_abs, tag = 'smem constant byte address 0x4 - core index']
  #allocation1 [shape = 'u32[144,128]{1,0:T(1,128)}', space=vmem, size = 0x12000, scoped, tag = 'internal scratch']
  #allocation2 [shape = 'f32[16,32]{1,0:T(8,128)}', space=vmem, size = 0x2000, scoped, tag = 'scratch operand']
  %s0 = inlined_call_operand.vmem [shape: f32[16,32], index: 0, kind: input, shape index: {}]
  %s1 = inlined_call_operand.vmem [shape: f32[2,32], index: 1, kind: input, shape index: {}]
  %s2 = inlined_call_operand.vmem [shape: f32[32,96], index: 2, kind: input, shape index: {}]
  %s3 = inlined_call_operand.vmem [shape: f32[32,96], index: 3, kind: input, shape index: {}]
  %s4 = inlined_call_operand.vmem [shape: f32[1,96], index: 4, kind: input, shape index: {}]
  %s5 = inlined_call_operand.vmem [shape: f32[1,96], index: 5, kind: input, shape index: {}]
  %s6 = inlined_call_operand.vmem [shape: f32[2,12,48], index: 6, kind: input, shape index: {}]
  %s7 = inlined_call_operand.vmem [shape: f32[2,1,12], index: 7, kind: input, shape index: {}]
  %s8 = inlined_call_operand.vmem [shape: f32[48,64], index: 8, kind: input, shape index: {}]
  %s9 = inlined_call_operand.vmem [shape: f32[80,32], index: 9, kind: input, shape index: {}]
  %s10 = inlined_call_operand.vmem [shape: f32[32,64], index: 10, kind: input, shape index: {}]
  %s11 = inlined_call_operand.vmem [shape: f32[2,8,128], index: 11, kind: output, shape index: {0}]
  %s12 = inlined_call_operand.hbm [shape: f32[2,32], index: 12, kind: output, shape index: {1}]
  %13 = xla_tuple %s11, %s12
  %s14 = sld [smem:[#allocation0]]
  $region89: #{decoder_forward.1} parent=0
    _
  %s16 = ssub.s32 1, %s14
  %s17 = scalar_select 0, %s16, %s14
  $region1: #{decoder_forward.1} parent=0
    #allocation3 [shape = 'u8[1024]{0}', space=vmem, size = 0x400, scoped, tag = 'output window, operand 1, single buffered']
    #allocation4 [shape = 's32[2]{0}', space=sflag, size = 0x8, scoped, tag = 'scoped memory for decoder_forward.1']
    %18 = vsyncpa [#allocation4], 0
    loop: start=0, step=1, limit=4
    $region2: #{decoder_forward.1} parent=1 // loop_pre_header
      _
    $region3: #{decoder_forward.1} parent=1 // loop_header
      %s20 = sphi 0, %s24
      %p21 = scmp.ge.s32.totalorder %s20, 4
      %s28 = sphi 0, %s28
      %s30 = sphi 0, %s28
      %s31 = sphi 0, %s30
      %s45 = sphi 0, %s31
      %s49 = sphi 0, %s49
      %s51 = sphi 0, %s49
      %s52 = sphi 0, %s51
      %s66 = sphi 0, %s52
      %s70 = sphi 0, %s70
      %s72 = sphi 0, %s70
      %s73 = sphi 0, %s72
      %s87 = sphi 0, %s73
      %s91 = sphi 0, %s91
      %s93 = sphi 0, %s91
      %s94 = sphi 0, %s93
      %s108 = sphi 0, %s94
      %s112 = sphi 0, %s112
      %s114 = sphi 0, %s112
      %s115 = sphi 0, %s114
      %s129 = sphi 0, %s115
      %s133 = sphi 0, %s133
      %s135 = sphi 0, %s133
      %s136 = sphi 0, %s135
      %s150 = sphi 0, %s136
      %s156 = sphi 0, %s158
      %s159 = sphi 0, %s156
      %s160 = sphi 0, %s159
      %s176 = sphi 0, %s160
      %s182 = sphi 0, %s184
      %s185 = sphi 0, %s182
      %s186 = sphi 0, %s185
      %s202 = sphi 0, %s186
      %s206 = sphi 0, %s206
      %s208 = sphi 0, %s206
      %s209 = sphi 0, %s208
      %s223 = sphi 0, %s209
      %s227 = sphi 0, %s227
      %s229 = sphi 0, %s227
      %s230 = sphi 0, %s229
      %s244 = sphi 0, %s230
      %s248 = sphi 0, %s248
      %s250 = sphi 0, %s248
      %s251 = sphi 0, %s250
      %s265 = sphi 0, %s251
      %s271 = sphi 0, %s273
      %s274 = sphi 0, %s271
      %s275 = sphi 0, %s274
      %s291 = sphi 0, %s275
      %s295 = sphi 0, %s295
      %s297 = sphi 0, %s295
      %s298 = sphi 0, %s297
      %s312 = sphi 0, %s298
    $region4: #{decoder_forward.1} parent=1 // loop_header_branch
      %23 = sbr.rel (%p21) target = $region8
    $region5: #{decoder_forward.1} parent=1 // loop_body
      %s25 = ssub.s32 %s20, 1
      %s26 = ssub.s32 %s20, 2
      %s27 = sadd.s32 %s20, 1
      %s29 = sadd.s32 %s28, 1
      %p32 = scmp.eq.s32.totalorder %s20, 1
      %p33 = scmp.ne.s32.totalorder %s28, %s30
      %p34 = scmp.eq.s32.totalorder %s20, 0
      %p35 = por %p33, %p34
      %p36 = scmp.ne.s32.totalorder %s28, %s30
      %p37 = scmp.eq.s32.totalorder %s25, 1
      %p38 = por %p36, %p37
      %p39 = scmp.ne.s32.totalorder %s30, %s31
      %p40 = scmp.eq.s32.totalorder %s25, 0
      %p41 = por %p39, %p40
      %p42 = scmp.ne.s32.totalorder %s30, %s31
      %p43 = scmp.eq.s32.totalorder %s26, 1
      %p44 = por %p42, %p43
      %p46 = scmp.ne.s32.totalorder %s31, %s45
      %p47 = scmp.eq.s32.totalorder %s26, 0
      %p48 = por %p46, %p47
      %s50 = sadd.s32 %s49, 1
      %p53 = scmp.eq.s32.totalorder %s20, 1
      %p54 = scmp.ne.s32.totalorder %s49, %s51
      %p55 = scmp.eq.s32.totalorder %s20, 0
      %p56 = por %p54, %p55
      %p57 = scmp.ne.s32.totalorder %s49, %s51
      %p58 = scmp.eq.s32.totalorder %s25, 1
      %p59 = por %p57, %p58
      %p60 = scmp.ne.s32.totalorder %s51, %s52
      %p61 = scmp.eq.s32.totalorder %s25, 0
      %p62 = por %p60, %p61
      %p63 = scmp.ne.s32.totalorder %s51, %s52
      %p64 = scmp.eq.s32.totalorder %s26, 1
      %p65 = por %p63, %p64
      %p67 = scmp.ne.s32.totalorder %s52, %s66
      %p68 = scmp.eq.s32.totalorder %s26, 0
      %p69 = por %p67, %p68
      %s71 = sadd.s32 %s70, 1
      %p74 = scmp.eq.s32.totalorder %s20, 1
      %p75 = scmp.ne.s32.totalorder %s70, %s72
      %p76 = scmp.eq.s32.totalorder %s20, 0
      %p77 = por %p75, %p76
      %p78 = scmp.ne.s32.totalorder %s70, %s72
      %p79 = scmp.eq.s32.totalorder %s25, 1
      %p80 = por %p78, %p79
      %p81 = scmp.ne.s32.totalorder %s72, %s73
      %p82 = scmp.eq.s32.totalorder %s25, 0
      %p83 = por %p81, %p82
      %p84 = scmp.ne.s32.totalorder %s72, %s73
      %p85 = scmp.eq.s32.totalorder %s26, 1
      %p86 = por %p84, %p85
      %p88 = scmp.ne.s32.totalorder %s73, %s87
      %p89 = scmp.eq.s32.totalorder %s26, 0
      %p90 = por %p88, %p89
      %s92 = sadd.s32 %s91, 1
      %p95 = scmp.eq.s32.totalorder %s20, 1
      %p96 = scmp.ne.s32.totalorder %s91, %s93
      %p97 = scmp.eq.s32.totalorder %s20, 0
      %p98 = por %p96, %p97
      %p99 = scmp.ne.s32.totalorder %s91, %s93
      %p100 = scmp.eq.s32.totalorder %s25, 1
      %p101 = por %p99, %p100
      %p102 = scmp.ne.s32.totalorder %s93, %s94
      %p103 = scmp.eq.s32.totalorder %s25, 0
      %p104 = por %p102, %p103
      %p105 = scmp.ne.s32.totalorder %s93, %s94
      %p106 = scmp.eq.s32.totalorder %s26, 1
      %p107 = por %p105, %p106
      %p109 = scmp.ne.s32.totalorder %s94, %s108
      %p110 = scmp.eq.s32.totalorder %s26, 0
      %p111 = por %p109, %p110
      %s113 = sadd.s32 %s112, 1
      %p116 = scmp.eq.s32.totalorder %s20, 1
      %p117 = scmp.ne.s32.totalorder %s112, %s114
      %p118 = scmp.eq.s32.totalorder %s20, 0
      %p119 = por %p117, %p118
      %p120 = scmp.ne.s32.totalorder %s112, %s114
      %p121 = scmp.eq.s32.totalorder %s25, 1
      %p122 = por %p120, %p121
      %p123 = scmp.ne.s32.totalorder %s114, %s115
      %p124 = scmp.eq.s32.totalorder %s25, 0
      %p125 = por %p123, %p124
      %p126 = scmp.ne.s32.totalorder %s114, %s115
      %p127 = scmp.eq.s32.totalorder %s26, 1
      %p128 = por %p126, %p127
      %p130 = scmp.ne.s32.totalorder %s115, %s129
      %p131 = scmp.eq.s32.totalorder %s26, 0
      %p132 = por %p130, %p131
      %s134 = sadd.s32 %s133, 1
      %p137 = scmp.eq.s32.totalorder %s20, 1
      %p138 = scmp.ne.s32.totalorder %s133, %s135
      %p139 = scmp.eq.s32.totalorder %s20, 0
      %p140 = por %p138, %p139
      %p141 = scmp.ne.s32.totalorder %s133, %s135
      %p142 = scmp.eq.s32.totalorder %s25, 1
      %p143 = por %p141, %p142
      %p144 = scmp.ne.s32.totalorder %s135, %s136
      %p145 = scmp.eq.s32.totalorder %s25, 0
      %p146 = por %p144, %p145
      %p147 = scmp.ne.s32.totalorder %s135, %s136
      %p148 = scmp.eq.s32.totalorder %s26, 1
      %p149 = por %p147, %p148
      %p151 = scmp.ne.s32.totalorder %s136, %s150
      %p152 = scmp.eq.s32.totalorder %s26, 0
      %p153 = por %p151, %p152
      %s154 = ssub.s32 %s20, %s27
      %p155 = scmp.eq.s32.totalorder %s154, 0
      %s157 = sadd.s32 %s156, 1
      %s158 = scalar_select %p155, %s156, %s157
      %p161 = pneg %p155
      %p162 = scmp.eq.s32.totalorder %s20, 1
      %p163 = por %p161, %p162
      %p164 = scmp.ne.s32.totalorder %s156, %s159
      %p165 = scmp.eq.s32.totalorder %s20, 0
      %p166 = por %p164, %p165
      %p167 = scmp.ne.s32.totalorder %s156, %s159
      %p168 = scmp.eq.s32.totalorder %s25, 1
      %p169 = por %p167, %p168
      %p170 = scmp.ne.s32.totalorder %s159, %s160
      %p171 = scmp.eq.s32.totalorder %s25, 0
      %p172 = por %p170, %p171
      %p173 = scmp.ne.s32.totalorder %s159, %s160
      %p174 = scmp.eq.s32.totalorder %s26, 1
      %p175 = por %p173, %p174
      %p177 = scmp.ne.s32.totalorder %s160, %s176
      %p178 = scmp.eq.s32.totalorder %s26, 0
      %p179 = por %p177, %p178
      %s180 = ssub.s32 %s20, %s27
      %p181 = scmp.eq.s32.totalorder %s180, 0
      %s183 = sadd.s32 %s182, 1
      %s184 = scalar_select %p181, %s182, %s183
      %p187 = pneg %p181
      %p188 = scmp.eq.s32.totalorder %s20, 1
      %p189 = por %p187, %p188
      %p190 = scmp.ne.s32.totalorder %s182, %s185
      %p191 = scmp.eq.s32.totalorder %s20, 0
      %p192 = por %p190, %p191
      %p193 = scmp.ne.s32.totalorder %s182, %s185
      %p194 = scmp.eq.s32.totalorder %s25, 1
      %p195 = por %p193, %p194
      %p196 = scmp.ne.s32.totalorder %s185, %s186
      %p197 = scmp.eq.s32.totalorder %s25, 0
      %p198 = por %p196, %p197
      %p199 = scmp.ne.s32.totalorder %s185, %s186
      %p200 = scmp.eq.s32.totalorder %s26, 1
      %p201 = por %p199, %p200
      %p203 = scmp.ne.s32.totalorder %s186, %s202
      %p204 = scmp.eq.s32.totalorder %s26, 0
      %p205 = por %p203, %p204
      %s207 = sadd.s32 %s206, 1
      %p210 = scmp.eq.s32.totalorder %s20, 1
      %p211 = scmp.ne.s32.totalorder %s206, %s208
      %p212 = scmp.eq.s32.totalorder %s20, 0
      %p213 = por %p211, %p212
      %p214 = scmp.ne.s32.totalorder %s206, %s208
      %p215 = scmp.eq.s32.totalorder %s25, 1
      %p216 = por %p214, %p215
      %p217 = scmp.ne.s32.totalorder %s208, %s209
      %p218 = scmp.eq.s32.totalorder %s25, 0
      %p219 = por %p217, %p218
      %p220 = scmp.ne.s32.totalorder %s208, %s209
      %p221 = scmp.eq.s32.totalorder %s26, 1
      %p222 = por %p220, %p221
      %p224 = scmp.ne.s32.totalorder %s209, %s223
      %p225 = scmp.eq.s32.totalorder %s26, 0
      %p226 = por %p224, %p225
      %s228 = sadd.s32 %s227, 1
      %p231 = scmp.eq.s32.totalorder %s20, 1
      %p232 = scmp.ne.s32.totalorder %s227, %s229
      %p233 = scmp.eq.s32.totalorder %s20, 0
      %p234 = por %p232, %p233
      %p235 = scmp.ne.s32.totalorder %s227, %s229
      %p236 = scmp.eq.s32.totalorder %s25, 1
      %p237 = por %p235, %p236
      %p238 = scmp.ne.s32.totalorder %s229, %s230
      %p239 = scmp.eq.s32.totalorder %s25, 0
      %p240 = por %p238, %p239
      %p241 = scmp.ne.s32.totalorder %s229, %s230
      %p242 = scmp.eq.s32.totalorder %s26, 1
      %p243 = por %p241, %p242
      %p245 = scmp.ne.s32.totalorder %s230, %s244
      %p246 = scmp.eq.s32.totalorder %s26, 0
      %p247 = por %p245, %p246
      %s249 = sadd.s32 %s248, 1
      %p252 = scmp.eq.s32.totalorder %s20, 1
      %p253 = scmp.ne.s32.totalorder %s248, %s250
      %p254 = scmp.eq.s32.totalorder %s20, 0
      %p255 = por %p253, %p254
      %p256 = scmp.ne.s32.totalorder %s248, %s250
      %p257 = scmp.eq.s32.totalorder %s25, 1
      %p258 = por %p256, %p257
      %p259 = scmp.ne.s32.totalorder %s250, %s251
      %p260 = scmp.eq.s32.totalorder %s25, 0
      %p261 = por %p259, %p260
      %p262 = scmp.ne.s32.totalorder %s250, %s251
      %p263 = scmp.eq.s32.totalorder %s26, 1
      %p264 = por %p262, %p263
      %p266 = scmp.ne.s32.totalorder %s251, %s265
      %p267 = scmp.eq.s32.totalorder %s26, 0
      %p268 = por %p266, %p267
      %s269 = ssub.s32 %s20, %s27
      %p270 = scmp.eq.s32.totalorder %s269, 0
      %s272 = sadd.s32 %s271, 1
      %s273 = scalar_select %p270, %s271, %s272
      %p276 = pneg %p270
      %p277 = scmp.eq.s32.totalorder %s20, 1
      %p278 = por %p276, %p277
      %p279 = scmp.ne.s32.totalorder %s271, %s274
      %p280 = scmp.eq.s32.totalorder %s20, 0
      %p281 = por %p279, %p280
      %p282 = scmp.ne.s32.totalorder %s271, %s274
      %p283 = scmp.eq.s32.totalorder %s25, 1
      %p284 = por %p282, %p283
      %p285 = scmp.ne.s32.totalorder %s274, %s275
      %p286 = scmp.eq.s32.totalorder %s25, 0
      %p287 = por %p285, %p286
      %p288 = scmp.ne.s32.totalorder %s274, %s275
      %p289 = scmp.eq.s32.totalorder %s26, 1
      %p290 = por %p288, %p289
      %p292 = scmp.ne.s32.totalorder %s275, %s291
      %p293 = scmp.eq.s32.totalorder %s26, 0
      %p294 = por %p292, %p293
      %s296 = sadd.s32 %s295, 1
      %p299 = scmp.eq.s32.totalorder %s20, 1
      %p300 = scmp.ne.s32.totalorder %s295, %s297
      %p301 = scmp.eq.s32.totalorder %s20, 0
      %p302 = por %p300, %p301
      %p303 = scmp.ne.s32.totalorder %s295, %s297
      %p304 = scmp.eq.s32.totalorder %s25, 1
      %p305 = por %p303, %p304
      %p306 = scmp.ne.s32.totalorder %s297, %s298
      %p307 = scmp.eq.s32.totalorder %s25, 0
      %p308 = por %p306, %p307
      %p309 = scmp.ne.s32.totalorder %s297, %s298
      %p310 = scmp.eq.s32.totalorder %s26, 1
      %p311 = por %p309, %p310
      %p313 = scmp.ne.s32.totalorder %s298, %s312
      %p314 = scmp.eq.s32.totalorder %s26, 0
      %p315 = por %p313, %p314
      %p316 = scmp.le.s32.totalorder 1, %s20
      %p317 = scmp.lt.s32.totalorder %s20, 3
      %p318 = pnand %p316, %p317
      %p319 = pneg %p318
      // Predicated region
      $region9: #{decoder_forward.1} parent=5 // pred_check
        _
      $region10: #{decoder_forward.1} parent=5 // pred_check_branch
        %321 = sbr.rel (%p318) target = $region12
      $region11: #{decoder_forward.1} parent=5 // pred_region
        %s322 = ssub.s32 %s20, 1
        // Predicated region
        $region13: #{decoder_forward.1} parent=11 // pred_check
          %p323 = pneg %p41
        $region14: #{decoder_forward.1} parent=11 // pred_check_branch
          %325 = sbr.rel (%p323) target = $region16
        $region15: #{decoder_forward.1} parent=11 // pred_region
          _
        $region16: #{decoder_forward.1} parent=11 // pred_fallthru
          _
        // Predicated region
        $region17: #{decoder_forward.1} parent=11 // pred_check
          %p326 = pneg %p62
        $region18: #{decoder_forward.1} parent=11 // pred_check_branch
          %328 = sbr.rel (%p326) target = $region20
        $region19: #{decoder_forward.1} parent=11 // pred_region
          _
        $region20: #{decoder_forward.1} parent=11 // pred_fallthru
          _
        // Predicated region
        $region21: #{decoder_forward.1} parent=11 // pred_check
          %p329 = pneg %p83
        $region22: #{decoder_forward.1} parent=11 // pred_check_branch
          %331 = sbr.rel (%p329) target = $region24
        $region23: #{decoder_forward.1} parent=11 // pred_region
          _
        $region24: #{decoder_forward.1} parent=11 // pred_fallthru
          _
        // Predicated region
        $region25: #{decoder_forward.1} parent=11 // pred_check
          %p332 = pneg %p104
        $region26: #{decoder_forward.1} parent=11 // pred_check_branch
          %334 = sbr.rel (%p332) target = $region28
        $region27: #{decoder_forward.1} parent=11 // pred_region
          _
        $region28: #{decoder_forward.1} parent=11 // pred_fallthru
          _
        // Predicated region
        $region29: #{decoder_forward.1} parent=11 // pred_check
          %p335 = pneg %p125
        $region30: #{decoder_forward.1} parent=11 // pred_check_branch
          %337 = sbr.rel (%p335) target = $region32
        $region31: #{decoder_forward.1} parent=11 // pred_region
          _
        $region32: #{decoder_forward.1} parent=11 // pred_fallthru
          _
        // Predicated region
        $region33: #{decoder_forward.1} parent=11 // pred_check
          %p338 = pneg %p146
        $region34: #{decoder_forward.1} parent=11 // pred_check_branch
          %340 = sbr.rel (%p338) target = $region36
        $region35: #{decoder_forward.1} parent=11 // pred_region
          _
        $region36: #{decoder_forward.1} parent=11 // pred_fallthru
          _
        // Predicated region
        $region37: #{decoder_forward.1} parent=11 // pred_check
          %p341 = pneg %p219
        $region38: #{decoder_forward.1} parent=11 // pred_check_branch
          %343 = sbr.rel (%p341) target = $region40
        $region39: #{decoder_forward.1} parent=11 // pred_region
          _
        $region40: #{decoder_forward.1} parent=11 // pred_fallthru
          _
        // Predicated region
        $region41: #{decoder_forward.1} parent=11 // pred_check
          %p344 = pneg %p240
        $region42: #{decoder_forward.1} parent=11 // pred_check_branch
          %346 = sbr.rel (%p344) target = $region44
        $region43: #{decoder_forward.1} parent=11 // pred_region
          _
        $region44: #{decoder_forward.1} parent=11 // pred_fallthru
          _
        // Predicated region
        $region45: #{decoder_forward.1} parent=11 // pred_check
          %p347 = pneg %p261
        $region46: #{decoder_forward.1} parent=11 // pred_check_branch
          %349 = sbr.rel (%p347) target = $region48
        $region47: #{decoder_forward.1} parent=11 // pred_region
          _
        $region48: #{decoder_forward.1} parent=11 // pred_fallthru
          _
      $region12: #{decoder_forward.1} parent=5 // pred_fallthru
        _
      %p350 = scmp.lt.s32.totalorder %s20, 2
      // Predicated region
      $region49: #{decoder_forward.1} parent=5 // pred_check
        %p351 = pneg %p350
      $region50: #{decoder_forward.1} parent=5 // pred_check_branch
        %353 = sbr.rel (%p351) target = $region52
      $region51: #{decoder_forward.1} parent=5 // pred_region
        // Predicated region
        $region53: #{decoder_forward.1} parent=51 // pred_check
          %p354 = pneg %p166
        $region54: #{decoder_forward.1} parent=51 // pred_check_branch
          %356 = sbr.rel (%p354) target = $region56
        $region55: #{decoder_forward.1} parent=51 // pred_region
          %p357 = scmp.lt.s32.totalorder %s20, 1
          %s358 = scalar_select %p357, %s20, 1
          %s359 = smul.addr %s358, 2
          %s360 = smul.addr %s359, 8
          %s361 = scalar_lea.vmem %s6, %s360
        $region56: #{decoder_forward.1} parent=51 // pred_fallthru
          _
        // Predicated region
        $region57: #{decoder_forward.1} parent=51 // pred_check
          %p362 = pneg %p192
        $region58: #{decoder_forward.1} parent=51 // pred_check_branch
          %364 = sbr.rel (%p362) target = $region60
        $region59: #{decoder_forward.1} parent=51 // pred_region
          %p365 = scmp.lt.s32.totalorder %s20, 1
          %s366 = scalar_select %p365, %s20, 1
          %s367 = scalar_lea.vmem %s7, %s366
        $region60: #{decoder_forward.1} parent=51 // pred_fallthru
          _
      $region52: #{decoder_forward.1} parent=5 // pred_fallthru
        _
      %p368 = scmp.le.s32.totalorder 1, %s20
      %p369 = scmp.lt.s32.totalorder %s20, 3
      %p370 = pnand %p368, %p369
      %p371 = pneg %p370
      // Predicated region
      $region61: #{decoder_forward.1} parent=5 // pred_check
        _
      $region62: #{decoder_forward.1} parent=5 // pred_check_branch
        %373 = sbr.rel (%p370) target = $region64
      $region63: #{decoder_forward.1} parent=5 // pred_region
        %s374 = ssub.s32 %s20, 1
        %p375 = pneg %p41
        %p376 = pneg %p38
        %p377 = pneg %p62
        %p378 = pneg %p59
        %p379 = pneg %p83
        %p380 = pneg %p80
        %p381 = pneg %p104
        %p382 = pneg %p101
        %p383 = pneg %p125
        %p384 = pneg %p122
        %p385 = pneg %p146
        %p386 = pneg %p143
        %p387 = scmp.lt.s32.totalorder %s25, 1
        %s388 = scalar_select %p387, %s25, 1
        %s389 = smul.addr %s388, 2
        %s390 = smul.addr %s389, 8
        %s391 = scalar_lea.vmem %s6, %s390
        %p392 = pneg %p172
        %p393 = pneg %p169
        %p394 = scmp.lt.s32.totalorder %s25, 1
        %s395 = scalar_select %p394, %s25, 1
        %s396 = scalar_lea.vmem %s7, %s395
        %p397 = pneg %p198
        %p398 = pneg %p195
        %p399 = pneg %p219
        %p400 = pneg %p216
        %p401 = pneg %p240
        %p402 = pneg %p237
        %p403 = pneg %p261
        %p404 = pneg %p258
        %p405 = pneg %p287
        %p406 = pneg %p284
        %p407 = scmp.lt.s32.totalorder %s25, 1
        %s408 = scalar_select %p407, %s25, 1
        %s409 = smul.addr %s408, 8
        %s410 = scalar_lea.vmem %s11, %s409
        %p411 = pneg %p308
        %p412 = pneg %p305
        %p413 = scmp.lt.s32.totalorder %s25, 1
        %s414 = scalar_select %p413, %s25, 1
        %s415 = smul.addr %s414, 2
        %s416 = smul.addr %s415, 8
        %s417 = scalar_lea.vmem %s6, %s416
        %p418 = scmp.lt.s32.totalorder %s25, 1
        %s419 = scalar_select %p418, %s25, 1
        %s420 = scalar_lea.vmem %s7, %s419
        %p421 = scmp.lt.s32.totalorder %s25, 1
        %s422 = scalar_select %p421, %s25, 1
        %s423 = smul.addr %s422, 8
        %s424 = scalar_lea.vmem %s11, %s423
        %p425 = scmp.eq.s32.totalorder %s25, 0
        // Predicated region
        $region65: #{decoder_forward.1} parent=63 // pred_check
          %p426 = pneg %p425
        $region66: #{decoder_forward.1} parent=63 // pred_check_branch
          %428 = sbr.rel (%p426) target = $region68
        $region67: #{decoder_forward.1} parent=63 // pred_region
          %v429 = vld [vmem:[%s0] sm:$0xff]
          %v430 = vld [vmem:[%s0 + $0x8] sm:$0xff]
          %v431 = vld [vmem:[%s2] sm:$0xff]
          %v432 = vld [vmem:[%s2 + $0x8] sm:$0xff]
          %v433 = vld [vmem:[%s2 + $0x10] sm:$0xff]
          %v434 = vld [vmem:[%s2 + $0x18] sm:$0xff]
          %v435 = vld [vmem:[%s4] sm:$0x1]
          %v437 = vlaneseq
          %v438 = vshrl.u32 %v437, 7
          %v439 = vsub.s32 0, %v438
          %v440 = vrot.slane %v435, %v439
          %vm442 = vcmask 261120
          %v444 = vsel %vm442, %v429, 0
          %v447 = vsel %vm442, %v430, 0
          %449 = vmatprep.subr.mxu0 0.0
          %450 = vmatpush1.msra.mxu0 0.0
          %451 = vmatprep.subr.mxu0 0.0
          %452 = vmatpush1.msra.mxu0 0.0
          %453 = vmatprep.subr.mxu0 0.0
          %454 = vmatpush1.msra.mxu0 0.0
          %455 = vmatprep.subr.mxu0 0.0
          %456 = vmatpush1.msra.mxu0 0.0
          %457 = vmatprep.subr.mxu0 0.0
          %458 = vmatpush1.msra.mxu0 0.0
          %459 = vmatprep.subr.mxu0 0.0
          %460 = vmatpush1.msra.mxu0 0.0
          %461 = vmatprep.subr.mxu0 0.0
          %462 = vmatpush1.msra.mxu0 0.0
          %463 = vmatprep.subr.mxu0 0.0
          %464 = vmatpush1.msra.mxu0 0.0
          %465 = vmatprep.subr.mxu0 0.0
          %466 = vmatpush1.msra.mxu0 0.0
          %467 = vmatprep.subr.mxu0 0.0
          %468 = vmatpush1.msra.mxu0 0.0
          %469 = vmatprep.subr.mxu0 0.0
          %470 = vmatpush1.msra.mxu0 0.0
          %471 = vmatprep.subr.mxu0 0.0
          %472 = vmatpush1.msra.mxu0 0.0
          %473 = vmatprep.subr.mxu0 0.0
          %474 = vmatpush1.msra.mxu0 %v434
          %475 = vmatprep.subr.mxu0 0.0
          %476 = vmatpush1.msra.mxu0 %v433
          %477 = vmatprep.subr.mxu0 0.0
          %478 = vmatpush1.msra.mxu0 %v432
          %479 = vmatprep.subr.mxu0 0.0
          %480 = vmatpush1.msra.mxu0 %v431
          %481 = vmatprep.subr.mxu0 0.0
          %482 = vmatpush2.msra.mxu0 0.0
          %483 = vmatprep.subr.mxu0 0.0
          %484 = vmatpush2.msra.mxu0 0.0
          %485 = vmatprep.subr.mxu0 0.0
          %486 = vmatpush2.msra.mxu0 0.0
          %487 = vmatprep.subr.mxu0 0.0
          %488 = vmatpush2.msra.mxu0 0.0
          %489 = vmatprep.subr.mxu0 0.0
          %490 = vmatpush2.msra.mxu0 0.0
          %491 = vmatprep.subr.mxu0 0.0
          %492 = vmatpush2.msra.mxu0 0.0
          %493 = vmatprep.subr.mxu0 0.0
          %494 = vmatpush2.msra.mxu0 0.0
          %495 = vmatprep.subr.mxu0 0.0
          %496 = vmatpush2.msra.mxu0 0.0
          %497 = vmatprep.subr.mxu0 0.0
          %498 = vmatpush2.msra.mxu0 0.0
          %499 = vmatprep.subr.mxu0 0.0
          %500 = vmatpush2.msra.mxu0 0.0
          %501 = vmatprep.subr.mxu0 0.0
          %502 = vmatpush2.msra.mxu0 0.0
          %503 = vmatprep.subr.mxu0 0.0
          %504 = vmatpush2.msra.mxu0 0.0
          %505 = vmatprep.subr.mxu0 0.0
          %506 = vmatpush2.msra.mxu0 0.0
          %507 = vmatprep.subr.mxu0 0.0
          %508 = vmatpush2.msra.mxu0 0.0
          %509 = vmatprep.subr.mxu0 0.0
          %510 = vmatpush2.msra.mxu0 0.0
          %511 = vmatprep.subr.mxu0 0.0
          %512 = vmatpush2.msra.mxu0 0.0
          %513 = vmatprep.mubr.f32.mxu0 0.0
          %514 = vmatmul.mubr.f32.gmra.mxu0 %v444
          %v515 = vpop.f32.mrf.mxu0
          %v516 = vadd.f32 %v440, %v515
          %v517 = vpop.f32.mrf.mxu0
          %518 = vmatprep.mubr.f32.mxu0 0.0
          %519 = vmatmul.mubr.f32.gmra.mxu0 %v447
          %v520 = vpop.f32.mrf.mxu0
          %v521 = vadd.f32 %v440, %v520
          %v522 = vpop.f32.mrf.mxu0
          %523 = vdwg.mxu0
          %v524 = vld [vmem:[%s3] sm:$0xff]
          %v525 = vld [vmem:[%s3 + $0x8] sm:$0xff]
          %v526 = vld [vmem:[%s3 + $0x10] sm:$0xff]
          %v527 = vld [vmem:[%s3 + $0x18] sm:$0xff]
          %v528 = vld [vmem:[%s5] sm:$0x1]
          %v529 = vld [vmem:[%s1] sm:$0x3]
          %v531 = vlaneseq
          %v532 = vshrl.u32 %v531, 7
          %v533 = vsub.s32 0, %v532
          %v534 = vrot.slane %v528, %v533
          %v537 = vsel %vm442, %v529, 0
          %539 = vmatprep.subr.mxu0 0.0
          %540 = vmatpush1.msra.mxu0 0.0
          %541 = vmatprep.subr.mxu0 0.0
          %542 = vmatpush1.msra.mxu0 0.0
          %543 = vmatprep.subr.mxu0 0.0
          %544 = vmatpush1.msra.mxu0 0.0
          %545 = vmatprep.subr.mxu0 0.0
          %546 = vmatpush1.msra.mxu0 0.0
          %547 = vmatprep.subr.mxu0 0.0
          %548 = vmatpush1.msra.mxu0 0.0
          %549 = vmatprep.subr.mxu0 0.0
          %550 = vmatpush1.msra.mxu0 0.0
          %551 = vmatprep.subr.mxu0 0.0
          %552 = vmatpush1.msra.mxu0 0.0
          %553 = vmatprep.subr.mxu0 0.0
          %554 = vmatpush1.msra.mxu0 0.0
          %555 = vmatprep.subr.mxu0 0.0
          %556 = vmatpush1.msra.mxu0 0.0
          %557 = vmatprep.subr.mxu0 0.0
          %558 = vmatpush1.msra.mxu0 0.0
          %559 = vmatprep.subr.mxu0 0.0
          %560 = vmatpush1.msra.mxu0 0.0
          %561 = vmatprep.subr.mxu0 0.0
          %562 = vmatpush1.msra.mxu0 0.0
          %563 = vmatprep.subr.mxu0 0.0
          %564 = vmatpush1.msra.mxu0 %v527
          %565 = vmatprep.subr.mxu0 0.0
          %566 = vmatpush1.msra.mxu0 %v526
          %567 = vmatprep.subr.mxu0 0.0
          %568 = vmatpush1.msra.mxu0 %v525
          %569 = vmatprep.subr.mxu0 0.0
          %570 = vmatpush1.msra.mxu0 %v524
          %571 = vmatprep.subr.mxu0 0.0
          %572 = vmatpush2.msra.mxu0 0.0
          %573 = vmatprep.subr.mxu0 0.0
          %574 = vmatpush2.msra.mxu0 0.0
          %575 = vmatprep.subr.mxu0 0.0
          %576 = vmatpush2.msra.mxu0 0.0
          %577 = vmatprep.subr.mxu0 0.0
          %578 = vmatpush2.msra.mxu0 0.0
          %579 = vmatprep.subr.mxu0 0.0
          %580 = vmatpush2.msra.mxu0 0.0
          %581 = vmatprep.subr.mxu0 0.0
          %582 = vmatpush2.msra.mxu0 0.0
          %583 = vmatprep.subr.mxu0 0.0
          %584 = vmatpush2.msra.mxu0 0.0
          %585 = vmatprep.subr.mxu0 0.0
          %586 = vmatpush2.msra.mxu0 0.0
          %587 = vmatprep.subr.mxu0 0.0
          %588 = vmatpush2.msra.mxu0 0.0
          %589 = vmatprep.subr.mxu0 0.0
          %590 = vmatpush2.msra.mxu0 0.0
          %591 = vmatprep.subr.mxu0 0.0
          %592 = vmatpush2.msra.mxu0 0.0
          %593 = vmatprep.subr.mxu0 0.0
          %594 = vmatpush2.msra.mxu0 0.0
          %595 = vmatprep.subr.mxu0 0.0
          %596 = vmatpush2.msra.mxu0 0.0
          %597 = vmatprep.subr.mxu0 0.0
          %598 = vmatpush2.msra.mxu0 0.0
          %599 = vmatprep.subr.mxu0 0.0
          %600 = vmatpush2.msra.mxu0 0.0
          %601 = vmatprep.subr.mxu0 0.0
          %602 = vmatpush2.msra.mxu0 0.0
          %603 = vmatprep.mubr.f32.mxu0 0.0
          %604 = vmatmul.mubr.f32.gmra.mxu0 %v537
          %v605 = vpop.f32.mrf.mxu0
          %v606 = vadd.f32 %v534, %v605
          %v607 = vpop.f32.mrf.mxu0
          %608 = vdwg.mxu0
          %v609 = vadd.f32 %v516, %v606
          %v610 = vxor.u32 %v609, 2147483648
          %v611 = vmul.f32 %v610, 1.442695
          %v612 = vpow.pop %v611
          %v613 = vadd.f32 %v612, 1.0
          %v614 = vrcp.pop %v613
          %v615 = vmul.f32 1.0, %v614
          %617 = vrot.lane.b32.xlu0 %v606, 64
          %v618 = vpop.permute.xlu0 %617
          %v620 = vmul.f32 %v615, %v618
          %622 = vrot.lane.b32.xlu0 %v620, 64
          %v623 = vpop.permute.xlu0 %622
          %v625 = vadd.f32 %v516, %v623
          %v626 = vtanh.pop %v625
          %v627 = vsub.f32 1.0, %v615
          %629 = vrot.lane.b32.xlu0 %v626, 96
          %v630 = vpop.permute.xlu0 %629
          %v632 = vmul.f32 %v627, %v630
          %633 = vrot.lane.b32.xlu0 %v529, 32
          %v634 = vpop.permute.xlu0 %633
          %v636 = vmul.f32 %v615, %v634
          %v637 = vadd.f32 %v632, %v636
          %639 = vrot.lane.b32.xlu0 %v637, 96
          %v640 = vpop.permute.xlu0 %639
          %vm642 = vcmask 253952
          %643 = vst.msk [vmem:[#allocation2] sm:$0x1] %vm642, %v640
          %vm644 = vcmask 254977
          %645 = vst.msk [vmem:[#allocation2 + $0x7] sm:$0x2] %vm644, %v640
          %v646 = vsel %vm442, %v640, 0
          %648 = vmatprep.subr.mxu0 0.0
          %649 = vmatpush1.msra.mxu0 0.0
          %650 = vmatprep.subr.mxu0 0.0
          %651 = vmatpush1.msra.mxu0 0.0
          %652 = vmatprep.subr.mxu0 0.0
          %653 = vmatpush1.msra.mxu0 0.0
          %654 = vmatprep.subr.mxu0 0.0
          %655 = vmatpush1.msra.mxu0 0.0
          %656 = vmatprep.subr.mxu0 0.0
          %657 = vmatpush1.msra.mxu0 0.0
          %658 = vmatprep.subr.mxu0 0.0
          %659 = vmatpush1.msra.mxu0 0.0
          %660 = vmatprep.subr.mxu0 0.0
          %661 = vmatpush1.msra.mxu0 0.0
          %662 = vmatprep.subr.mxu0 0.0
          %663 = vmatpush1.msra.mxu0 0.0
          %664 = vmatprep.subr.mxu0 0.0
          %665 = vmatpush1.msra.mxu0 0.0
          %666 = vmatprep.subr.mxu0 0.0
          %667 = vmatpush1.msra.mxu0 0.0
          %668 = vmatprep.subr.mxu0 0.0
          %669 = vmatpush1.msra.mxu0 0.0
          %670 = vmatprep.subr.mxu0 0.0
          %671 = vmatpush1.msra.mxu0 0.0
          %672 = vmatprep.subr.mxu0 0.0
          %673 = vmatpush1.msra.mxu0 %v527
          %674 = vmatprep.subr.mxu0 0.0
          %675 = vmatpush1.msra.mxu0 %v526
          %676 = vmatprep.subr.mxu0 0.0
          %677 = vmatpush1.msra.mxu0 %v525
          %678 = vmatprep.subr.mxu0 0.0
          %679 = vmatpush1.msra.mxu0 %v524
          %680 = vmatprep.subr.mxu0 0.0
          %681 = vmatpush2.msra.mxu0 0.0
          %682 = vmatprep.subr.mxu0 0.0
          %683 = vmatpush2.msra.mxu0 0.0
          %684 = vmatprep.subr.mxu0 0.0
          %685 = vmatpush2.msra.mxu0 0.0
          %686 = vmatprep.subr.mxu0 0.0
          %687 = vmatpush2.msra.mxu0 0.0
          %688 = vmatprep.subr.mxu0 0.0
          %689 = vmatpush2.msra.mxu0 0.0
          %690 = vmatprep.subr.mxu0 0.0
          %691 = vmatpush2.msra.mxu0 0.0
          %692 = vmatprep.subr.mxu0 0.0
          %693 = vmatpush2.msra.mxu0 0.0
          %694 = vmatprep.subr.mxu0 0.0
          %695 = vmatpush2.msra.mxu0 0.0
          %696 = vmatprep.subr.mxu0 0.0
          %697 = vmatpush2.msra.mxu0 0.0
          %698 = vmatprep.subr.mxu0 0.0
          %699 = vmatpush2.msra.mxu0 0.0
          %700 = vmatprep.subr.mxu0 0.0
          %701 = vmatpush2.msra.mxu0 0.0
          %702 = vmatprep.subr.mxu0 0.0
          %703 = vmatpush2.msra.mxu0 0.0
          %704 = vmatprep.subr.mxu0 0.0
          %705 = vmatpush2.msra.mxu0 0.0
          %706 = vmatprep.subr.mxu0 0.0
          %707 = vmatpush2.msra.mxu0 0.0
          %708 = vmatprep.subr.mxu0 0.0
          %709 = vmatpush2.msra.mxu0 0.0
          %710 = vmatprep.subr.mxu0 0.0
          %711 = vmatpush2.msra.mxu0 0.0
          %712 = vmatprep.mubr.f32.mxu0 0.0
          %713 = vmatmul.mubr.f32.gmra.mxu0 %v646
          %v714 = vpop.f32.mrf.mxu0
          %v715 = vadd.f32 %v534, %v714
          %v716 = vpop.f32.mrf.mxu0
          %717 = vdwg.mxu0
          %v719 = vrot.slane %v715, 6
          %v721 = vadd.f32 %v516, %v719
          %v722 = vxor.u32 %v721, 2147483648
          %v723 = vmul.f32 %v722, 1.442695
          %v724 = vpow.pop %v723
          %v725 = vadd.f32 %v724, 1.0
          %v726 = vrcp.pop %v725
          %v727 = vmul.f32 1.0, %v726
          %728 = vrot.lane.b32.xlu0 %v719, 64
          %v729 = vpop.permute.xlu0 %728
          %v731 = vmul.f32 %v727, %v729
          %733 = vrot.lane.b32.xlu0 %v731, 64
          %v734 = vpop.permute.xlu0 %733
          %v736 = vadd.f32 %v516, %v734
          %v737 = vtanh.pop %v736
          %v738 = vsub.f32 1.0, %v727
          %740 = vrot.lane.b32.xlu0 %v737, 96
          %v741 = vpop.permute.xlu0 %740
          %v743 = vmul.f32 %v738, %v741
          %v744 = vrot.slane %v637, 6
          %v746 = vmul.f32 %v727, %v744
          %v747 = vadd.f32 %v743, %v746
          %749 = vrot.lane.b32.xlu0 %v747, 96
          %v750 = vpop.permute.xlu0 %749
          %vm752 = vcmask 256002
          %753 = vst.msk [vmem:[#allocation2 - $0x1] sm:$0x4] %vm752, %v750
          %vm754 = vcmask 257027
          %755 = vst.msk [vmem:[#allocation2 + $0x6] sm:$0x8] %vm754, %v750
          %v756 = vrot.slane %v747, 2
          %757 = vrot.lane.b32.xlu0 %v756, 96
          %v758 = vpop.permute.xlu0 %757
          %v759 = vsel %vm442, %v758, 0
          %761 = vmatprep.subr.mxu0 0.0
          %762 = vmatpush1.msra.mxu0 0.0
          %763 = vmatprep.subr.mxu0 0.0
          %764 = vmatpush1.msra.mxu0 0.0
          %765 = vmatprep.subr.mxu0 0.0
          %766 = vmatpush1.msra.mxu0 0.0
          %767 = vmatprep.subr.mxu0 0.0
          %768 = vmatpush1.msra.mxu0 0.0
          %769 = vmatprep.subr.mxu0 0.0
          %770 = vmatpush1.msra.mxu0 0.0
          %771 = vmatprep.subr.mxu0 0.0
          %772 = vmatpush1.msra.mxu0 0.0
          %773 = vmatprep.subr.mxu0 0.0
          %774 = vmatpush1.msra.mxu0 0.0
          %775 = vmatprep.subr.mxu0 0.0
          %776 = vmatpush1.msra.mxu0 0.0
          %777 = vmatprep.subr.mxu0 0.0
          %778 = vmatpush1.msra.mxu0 0.0
          %779 = vmatprep.subr.mxu0 0.0
          %780 = vmatpush1.msra.mxu0 0.0
          %781 = vmatprep.subr.mxu0 0.0
          %782 = vmatpush1.msra.mxu0 0.0
          %783 = vmatprep.subr.mxu0 0.0
          %784 = vmatpush1.msra.mxu0 0.0
          %785 = vmatprep.subr.mxu0 0.0
          %786 = vmatpush1.msra.mxu0 %v527
          %787 = vmatprep.subr.mxu0 0.0
          %788 = vmatpush1.msra.mxu0 %v526
          %789 = vmatprep.subr.mxu0 0.0
          %790 = vmatpush1.msra.mxu0 %v525
          %791 = vmatprep.subr.mxu0 0.0
          %792 = vmatpush1.msra.mxu0 %v524
          %793 = vmatprep.subr.mxu0 0.0
          %794 = vmatpush2.msra.mxu0 0.0
          %795 = vmatprep.subr.mxu0 0.0
          %796 = vmatpush2.msra.mxu0 0.0
          %797 = vmatprep.subr.mxu0 0.0
          %798 = vmatpush2.msra.mxu0 0.0
          %799 = vmatprep.subr.mxu0 0.0
          %800 = vmatpush2.msra.mxu0 0.0
          %801 = vmatprep.subr.mxu0 0.0
          %802 = vmatpush2.msra.mxu0 0.0
          %803 = vmatprep.subr.mxu0 0.0
          %804 = vmatpush2.msra.mxu0 0.0
          %805 = vmatprep.subr.mxu0 0.0
          %806 = vmatpush2.msra.mxu0 0.0
          %807 = vmatprep.subr.mxu0 0.0
          %808 = vmatpush2.msra.mxu0 0.0
          %809 = vmatprep.subr.mxu0 0.0
          %810 = vmatpush2.msra.mxu0 0.0
          %811 = vmatprep.subr.mxu0 0.0
          %812 = vmatpush2.msra.mxu0 0.0
          %813 = vmatprep.subr.mxu0 0.0
          %814 = vmatpush2.msra.mxu0 0.0
          %815 = vmatprep.subr.mxu0 0.0
          %816 = vmatpush2.msra.mxu0 0.0
          %817 = vmatprep.subr.mxu0 0.0
          %818 = vmatpush2.msra.mxu0 0.0
          %819 = vmatprep.subr.mxu0 0.0
          %820 = vmatpush2.msra.mxu0 0.0
          %821 = vmatprep.subr.mxu0 0.0
          %822 = vmatpush2.msra.mxu0 0.0
          %823 = vmatprep.subr.mxu0 0.0
          %824 = vmatpush2.msra.mxu0 0.0
          %825 = vmatprep.mubr.f32.mxu0 0.0
          %826 = vmatmul.mubr.f32.gmra.mxu0 %v759
          %v827 = vpop.f32.mrf.mxu0
          %v828 = vadd.f32 %v534, %v827
          %v829 = vpop.f32.mrf.mxu0
          %830 = vdwg.mxu0
          %v832 = vrot.slane %v828, 4
          %v834 = vadd.f32 %v516, %v832
          %v835 = vxor.u32 %v834, 2147483648
          %v836 = vmul.f32 %v835, 1.442695
          %v837 = vpow.pop %v836
          %v838 = vadd.f32 %v837, 1.0
          %v839 = vrcp.pop %v838
          %v840 = vmul.f32 1.0, %v839
          %841 = vrot.lane.b32.xlu0 %v832, 64
          %v842 = vpop.permute.xlu0 %841
          %v844 = vmul.f32 %v840, %v842
          %846 = vrot.lane.b32.xlu0 %v844, 64
          %v847 = vpop.permute.xlu0 %846
          %v849 = vadd.f32 %v516, %v847
          %v850 = vtanh.pop %v849
          %v851 = vsub.f32 1.0, %v840
          %853 = vrot.lane.b32.xlu0 %v850, 96
          %v854 = vpop.permute.xlu0 %853
          %v856 = vmul.f32 %v851, %v854
          %v857 = vrot.slane %v747, 6
          %v859 = vmul.f32 %v840, %v857
          %v860 = vadd.f32 %v856, %v859
          %862 = vrot.lane.b32.xlu0 %v860, 96
          %v863 = vpop.permute.xlu0 %862
          %vm865 = vcmask 258052
          %866 = vst.msk [vmem:[#allocation2 - $0x2] sm:$0x10] %vm865, %v863
          %vm867 = vcmask 259077
          %868 = vst.msk [vmem:[#allocation2 + $0x5] sm:$0x20] %vm867, %v863
          %v869 = vrot.slane %v860, 4
          %870 = vrot.lane.b32.xlu0 %v869, 96
          %v871 = vpop.permute.xlu0 %870
          %v872 = vsel %vm442, %v871, 0
          %874 = vmatprep.subr.mxu0 0.0
          %875 = vmatpush1.msra.mxu0 0.0
          %876 = vmatprep.subr.mxu0 0.0
          %877 = vmatpush1.msra.mxu0 0.0
          %878 = vmatprep.subr.mxu0 0.0
          %879 = vmatpush1.msra.mxu0 0.0
          %880 = vmatprep.subr.mxu0 0.0
          %881 = vmatpush1.msra.mxu0 0.0
          %882 = vmatprep.subr.mxu0 0.0
          %883 = vmatpush1.msra.mxu0 0.0
          %884 = vmatprep.subr.mxu0 0.0
          %885 = vmatpush1.msra.mxu0 0.0
          %886 = vmatprep.subr.mxu0 0.0
          %887 = vmatpush1.msra.mxu0 0.0
          %888 = vmatprep.subr.mxu0 0.0
          %889 = vmatpush1.msra.mxu0 0.0
          %890 = vmatprep.subr.mxu0 0.0
          %891 = vmatpush1.msra.mxu0 0.0
          %892 = vmatprep.subr.mxu0 0.0
          %893 = vmatpush1.msra.mxu0 0.0
          %894 = vmatprep.subr.mxu0 0.0
          %895 = vmatpush1.msra.mxu0 0.0
          %896 = vmatprep.subr.mxu0 0.0
          %897 = vmatpush1.msra.mxu0 0.0
          %898 = vmatprep.subr.mxu0 0.0
          %899 = vmatpush1.msra.mxu0 %v527
          %900 = vmatprep.subr.mxu0 0.0
          %901 = vmatpush1.msra.mxu0 %v526
          %902 = vmatprep.subr.mxu0 0.0
          %903 = vmatpush1.msra.mxu0 %v525
          %904 = vmatprep.subr.mxu0 0.0
          %905 = vmatpush1.msra.mxu0 %v524
          %906 = vmatprep.subr.mxu0 0.0
          %907 = vmatpush2.msra.mxu0 0.0
          %908 = vmatprep.subr.mxu0 0.0
          %909 = vmatpush2.msra.mxu0 0.0
          %910 = vmatprep.subr.mxu0 0.0
          %911 = vmatpush2.msra.mxu0 0.0
          %912 = vmatprep.subr.mxu0 0.0
          %913 = vmatpush2.msra.mxu0 0.0
          %914 = vmatprep.subr.mxu0 0.0
          %915 = vmatpush2.msra.mxu0 0.0
          %916 = vmatprep.subr.mxu0 0.0
          %917 = vmatpush2.msra.mxu0 0.0
          %918 = vmatprep.subr.mxu0 0.0
          %919 = vmatpush2.msra.mxu0 0.0
          %920 = vmatprep.subr.mxu0 0.0
          %921 = vmatpush2.msra.mxu0 0.0
          %922 = vmatprep.subr.mxu0 0.0
          %923 = vmatpush2.msra.mxu0 0.0
          %924 = vmatprep.subr.mxu0 0.0
          %925 = vmatpush2.msra.mxu0 0.0
          %926 = vmatprep.subr.mxu0 0.0
          %927 = vmatpush2.msra.mxu0 0.0
          %928 = vmatprep.subr.mxu0 0.0
          %929 = vmatpush2.msra.mxu0 0.0
          %930 = vmatprep.subr.mxu0 0.0
          %931 = vmatpush2.msra.mxu0 0.0
          %932 = vmatprep.subr.mxu0 0.0
          %933 = vmatpush2.msra.mxu0 0.0
          %934 = vmatprep.subr.mxu0 0.0
          %935 = vmatpush2.msra.mxu0 0.0
          %936 = vmatprep.subr.mxu0 0.0
          %937 = vmatpush2.msra.mxu0 0.0
          %938 = vmatprep.mubr.f32.mxu0 0.0
          %939 = vmatmul.mubr.f32.gmra.mxu0 %v872
          %v940 = vpop.f32.mrf.mxu0
          %v941 = vadd.f32 %v534, %v940
          %v942 = vpop.f32.mrf.mxu0
          %943 = vdwg.mxu0
          %v945 = vrot.slane %v941, 2
          %v947 = vadd.f32 %v516, %v945
          %v948 = vxor.u32 %v947, 2147483648
          %v949 = vmul.f32 %v948, 1.442695
          %v950 = vpow.pop %v949
          %v951 = vadd.f32 %v950, 1.0
          %v952 = vrcp.pop %v951
          %v953 = vmul.f32 1.0, %v952
          %954 = vrot.lane.b32.xlu0 %v945, 64
          %v955 = vpop.permute.xlu0 %954
          %v957 = vmul.f32 %v953, %v955
          %959 = vrot.lane.b32.xlu0 %v957, 64
          %v960 = vpop.permute.xlu0 %959
          %v962 = vadd.f32 %v516, %v960
          %v963 = vtanh.pop %v962
          %v964 = vsub.f32 1.0, %v953
          %966 = vrot.lane.b32.xlu0 %v963, 96
          %v967 = vpop.permute.xlu0 %966
          %v969 = vmul.f32 %v964, %v967
          %v970 = vrot.slane %v860, 6
          %v972 = vmul.f32 %v953, %v970
          %v973 = vadd.f32 %v969, %v972
          %975 = vrot.lane.b32.xlu0 %v973, 96
          %v976 = vpop.permute.xlu0 %975
          %vm978 = vcmask 260102
          %979 = vst.msk [vmem:[#allocation2 - $0x3] sm:$0x40] %vm978, %v976
          %vm980 = vcmask 261127
          %981 = vst.msk [vmem:[#allocation2 + $0x4] sm:$0x80] %vm980, %v976
          %v982 = vrot.slane %v973, 6
          %983 = vrot.lane.b32.xlu0 %v982, 96
          %v984 = vpop.permute.xlu0 %983
          %v985 = vsel %vm442, %v984, 0
          %987 = vmatprep.subr.mxu0 0.0
          %988 = vmatpush1.msra.mxu0 0.0
          %989 = vmatprep.subr.mxu0 0.0
          %990 = vmatpush1.msra.mxu0 0.0
          %991 = vmatprep.subr.mxu0 0.0
          %992 = vmatpush1.msra.mxu0 0.0
          %993 = vmatprep.subr.mxu0 0.0
          %994 = vmatpush1.msra.mxu0 0.0
          %995 = vmatprep.subr.mxu0 0.0
          %996 = vmatpush1.msra.mxu0 0.0
          %997 = vmatprep.subr.mxu0 0.0
          %998 = vmatpush1.msra.mxu0 0.0
          %999 = vmatprep.subr.mxu0 0.0
          %1000 = vmatpush1.msra.mxu0 0.0
          %1001 = vmatprep.subr.mxu0 0.0
          %1002 = vmatpush1.msra.mxu0 0.0
          %1003 = vmatprep.subr.mxu0 0.0
          %1004 = vmatpush1.msra.mxu0 0.0
          %1005 = vmatprep.subr.mxu0 0.0
          %1006 = vmatpush1.msra.mxu0 0.0
          %1007 = vmatprep.subr.mxu0 0.0
          %1008 = vmatpush1.msra.mxu0 0.0
          %1009 = vmatprep.subr.mxu0 0.0
          %1010 = vmatpush1.msra.mxu0 0.0
          %1011 = vmatprep.subr.mxu0 0.0
          %1012 = vmatpush1.msra.mxu0 %v527
          %1013 = vmatprep.subr.mxu0 0.0
          %1014 = vmatpush1.msra.mxu0 %v526
          %1015 = vmatprep.subr.mxu0 0.0
          %1016 = vmatpush1.msra.mxu0 %v525
          %1017 = vmatprep.subr.mxu0 0.0
          %1018 = vmatpush1.msra.mxu0 %v524
          %1019 = vmatprep.subr.mxu0 0.0
          %1020 = vmatpush2.msra.mxu0 0.0
          %1021 = vmatprep.subr.mxu0 0.0
          %1022 = vmatpush2.msra.mxu0 0.0
          %1023 = vmatprep.subr.mxu0 0.0
          %1024 = vmatpush2.msra.mxu0 0.0
          %1025 = vmatprep.subr.mxu0 0.0
          %1026 = vmatpush2.msra.mxu0 0.0
          %1027 = vmatprep.subr.mxu0 0.0
          %1028 = vmatpush2.msra.mxu0 0.0
          %1029 = vmatprep.subr.mxu0 0.0
          %1030 = vmatpush2.msra.mxu0 0.0
          %1031 = vmatprep.subr.mxu0 0.0
          %1032 = vmatpush2.msra.mxu0 0.0
          %1033 = vmatprep.subr.mxu0 0.0
          %1034 = vmatpush2.msra.mxu0 0.0
          %1035 = vmatprep.subr.mxu0 0.0
          %1036 = vmatpush2.msra.mxu0 0.0
          %1037 = vmatprep.subr.mxu0 0.0
          %1038 = vmatpush2.msra.mxu0 0.0
          %1039 = vmatprep.subr.mxu0 0.0
          %1040 = vmatpush2.msra.mxu0 0.0
          %1041 = vmatprep.subr.mxu0 0.0
          %1042 = vmatpush2.msra.mxu0 0.0
          %1043 = vmatprep.subr.mxu0 0.0
          %1044 = vmatpush2.msra.mxu0 0.0
          %1045 = vmatprep.subr.mxu0 0.0
          %1046 = vmatpush2.msra.mxu0 0.0
          %1047 = vmatprep.subr.mxu0 0.0
          %1048 = vmatpush2.msra.mxu0 0.0
          %1049 = vmatprep.subr.mxu0 0.0
          %1050 = vmatpush2.msra.mxu0 0.0
          %1051 = vmatprep.mubr.f32.mxu0 0.0
          %1052 = vmatmul.mubr.f32.gmra.mxu0 %v985
          %v1053 = vpop.f32.mrf.mxu0
          %v1054 = vadd.f32 %v534, %v1053
          %v1055 = vpop.f32.mrf.mxu0
          %1056 = vdwg.mxu0
          %v1057 = vadd.f32 %v521, %v1054
          %v1058 = vxor.u32 %v1057, 2147483648
          %v1059 = vmul.f32 %v1058, 1.442695
          %v1060 = vpow.pop %v1059
          %v1061 = vadd.f32 %v1060, 1.0
          %v1062 = vrcp.pop %v1061
          %v1063 = vmul.f32 1.0, %v1062
          %1065 = vrot.lane.b32.xlu0 %v1054, 64
          %v1066 = vpop.permute.xlu0 %1065
          %v1068 = vmul.f32 %v1063, %v1066
          %1070 = vrot.lane.b32.xlu0 %v1068, 64
          %v1071 = vpop.permute.xlu0 %1070
          %v1073 = vadd.f32 %v521, %v1071
          %v1074 = vtanh.pop %v1073
          %v1075 = vsub.f32 1.0, %v1063
          %1077 = vrot.lane.b32.xlu0 %v1074, 96
          %v1078 = vpop.permute.xlu0 %1077
          %v1080 = vmul.f32 %v1075, %v1078
          %v1082 = vmul.f32 %v1063, %v982
          %v1083 = vadd.f32 %v1080, %v1082
          %1085 = vrot.lane.b32.xlu0 %v1083, 96
          %v1086 = vpop.permute.xlu0 %1085
          %1088 = vst.msk [vmem:[#allocation2 + $0x4] sm:$0x1] %vm642, %v1086
          %1089 = vst.msk [vmem:[#allocation2 + $0xb] sm:$0x2] %vm644, %v1086
          %v1090 = vsel %vm442, %v1086, 0
          %1092 = vmatprep.subr.mxu0 0.0
          %1093 = vmatpush1.msra.mxu0 0.0
          %1094 = vmatprep.subr.mxu0 0.0
          %1095 = vmatpush1.msra.mxu0 0.0
          %1096 = vmatprep.subr.mxu0 0.0
          %1097 = vmatpush1.msra.mxu0 0.0
          %1098 = vmatprep.subr.mxu0 0.0
          %1099 = vmatpush1.msra.mxu0 0.0
          %1100 = vmatprep.subr.mxu0 0.0
          %1101 = vmatpush1.msra.mxu0 0.0
          %1102 = vmatprep.subr.mxu0 0.0
          %1103 = vmatpush1.msra.mxu0 0.0
          %1104 = vmatprep.subr.mxu0 0.0
          %1105 = vmatpush1.msra.mxu0 0.0
          %1106 = vmatprep.subr.mxu0 0.0
          %1107 = vmatpush1.msra.mxu0 0.0
          %1108 = vmatprep.subr.mxu0 0.0
          %1109 = vmatpush1.msra.mxu0 0.0
          %1110 = vmatprep.subr.mxu0 0.0
          %1111 = vmatpush1.msra.mxu0 0.0
          %1112 = vmatprep.subr.mxu0 0.0
          %1113 = vmatpush1.msra.mxu0 0.0
          %1114 = vmatprep.subr.mxu0 0.0
          %1115 = vmatpush1.msra.mxu0 0.0
          %1116 = vmatprep.subr.mxu0 0.0
          %1117 = vmatpush1.msra.mxu0 %v527
          %1118 = vmatprep.subr.mxu0 0.0
          %1119 = vmatpush1.msra.mxu0 %v526
          %1120 = vmatprep.subr.mxu0 0.0
          %1121 = vmatpush1.msra.mxu0 %v525
          %1122 = vmatprep.subr.mxu0 0.0
          %1123 = vmatpush1.msra.mxu0 %v524
          %1124 = vmatprep.subr.mxu0 0.0
          %1125 = vmatpush2.msra.mxu0 0.0
          %1126 = vmatprep.subr.mxu0 0.0
          %1127 = vmatpush2.msra.mxu0 0.0
          %1128 = vmatprep.subr.mxu0 0.0
          %1129 = vmatpush2.msra.mxu0 0.0
          %1130 = vmatprep.subr.mxu0 0.0
          %1131 = vmatpush2.msra.mxu0 0.0
          %1132 = vmatprep.subr.mxu0 0.0
          %1133 = vmatpush2.msra.mxu0 0.0
          %1134 = vmatprep.subr.mxu0 0.0
          %1135 = vmatpush2.msra.mxu0 0.0
          %1136 = vmatprep.subr.mxu0 0.0
          %1137 = vmatpush2.msra.mxu0 0.0
          %1138 = vmatprep.subr.mxu0 0.0
          %1139 = vmatpush2.msra.mxu0 0.0
          %1140 = vmatprep.subr.mxu0 0.0
          %1141 = vmatpush2.msra.mxu0 0.0
          %1142 = vmatprep.subr.mxu0 0.0
          %1143 = vmatpush2.msra.mxu0 0.0
          %1144 = vmatprep.subr.mxu0 0.0
          %1145 = vmatpush2.msra.mxu0 0.0
          %1146 = vmatprep.subr.mxu0 0.0
          %1147 = vmatpush2.msra.mxu0 0.0
          %1148 = vmatprep.subr.mxu0 0.0
          %1149 = vmatpush2.msra.mxu0 0.0
          %1150 = vmatprep.subr.mxu0 0.0
          %1151 = vmatpush2.msra.mxu0 0.0
          %1152 = vmatprep.subr.mxu0 0.0
          %1153 = vmatpush2.msra.mxu0 0.0
          %1154 = vmatprep.subr.mxu0 0.0
          %1155 = vmatpush2.msra.mxu0 0.0
          %1156 = vmatprep.mubr.f32.mxu0 0.0
          %1157 = vmatmul.mubr.f32.gmra.mxu0 %v1090
          %v1158 = vpop.f32.mrf.mxu0
          %v1159 = vadd.f32 %v534, %v1158
          %v1160 = vpop.f32.mrf.mxu0
          %1161 = vdwg.mxu0
          %v1163 = vrot.slane %v1159, 6
          %v1165 = vadd.f32 %v521, %v1163
          %v1166 = vxor.u32 %v1165, 2147483648
          %v1167 = vmul.f32 %v1166, 1.442695
          %v1168 = vpow.pop %v1167
          %v1169 = vadd.f32 %v1168, 1.0
          %v1170 = vrcp.pop %v1169
          %v1171 = vmul.f32 1.0, %v1170
          %1172 = vrot.lane.b32.xlu0 %v1163, 64
          %v1173 = vpop.permute.xlu0 %1172
          %v1175 = vmul.f32 %v1171, %v1173
          %1177 = vrot.lane.b32.xlu0 %v1175, 64
          %v1178 = vpop.permute.xlu0 %1177
          %v1180 = vadd.f32 %v521, %v1178
          %v1181 = vtanh.pop %v1180
          %v1182 = vsub.f32 1.0, %v1171
          %1184 = vrot.lane.b32.xlu0 %v1181, 96
          %v1185 = vpop.permute.xlu0 %1184
          %v1187 = vmul.f32 %v1182, %v1185
          %v1188 = vrot.slane %v1083, 6
          %v1190 = vmul.f32 %v1171, %v1188
          %v1191 = vadd.f32 %v1187, %v1190
          %1193 = vrot.lane.b32.xlu0 %v1191, 96
          %v1194 = vpop.permute.xlu0 %1193
          %1196 = vst.msk [vmem:[#allocation2 + $0x3] sm:$0x4] %vm752, %v1194
          %1197 = vst.msk [vmem:[#allocation2 + $0xa] sm:$0x8] %vm754, %v1194
          %v1198 = vrot.slane %v1191, 2
          %1199 = vrot.lane.b32.xlu0 %v1198, 96
          %v1200 = vpop.permute.xlu0 %1199
          %v1201 = vsel %vm442, %v1200, 0
          %1203 = vmatprep.subr.mxu0 0.0
          %1204 = vmatpush1.msra.mxu0 0.0
          %1205 = vmatprep.subr.mxu0 0.0
          %1206 = vmatpush1.msra.mxu0 0.0
          %1207 = vmatprep.subr.mxu0 0.0
          %1208 = vmatpush1.msra.mxu0 0.0
          %1209 = vmatprep.subr.mxu0 0.0
          %1210 = vmatpush1.msra.mxu0 0.0
          %1211 = vmatprep.subr.mxu0 0.0
          %1212 = vmatpush1.msra.mxu0 0.0
          %1213 = vmatprep.subr.mxu0 0.0
          %1214 = vmatpush1.msra.mxu0 0.0
          %1215 = vmatprep.subr.mxu0 0.0
          %1216 = vmatpush1.msra.mxu0 0.0
          %1217 = vmatprep.subr.mxu0 0.0
          %1218 = vmatpush1.msra.mxu0 0.0
          %1219 = vmatprep.subr.mxu0 0.0
          %1220 = vmatpush1.msra.mxu0 0.0
          %1221 = vmatprep.subr.mxu0 0.0
          %1222 = vmatpush1.msra.mxu0 0.0
          %1223 = vmatprep.subr.mxu0 0.0
          %1224 = vmatpush1.msra.mxu0 0.0
          %1225 = vmatprep.subr.mxu0 0.0
          %1226 = vmatpush1.msra.mxu0 0.0
          %1227 = vmatprep.subr.mxu0 0.0
          %1228 = vmatpush1.msra.mxu0 %v527
          %1229 = vmatprep.subr.mxu0 0.0
          %1230 = vmatpush1.msra.mxu0 %v526
          %1231 = vmatprep.subr.mxu0 0.0
          %1232 = vmatpush1.msra.mxu0 %v525
          %1233 = vmatprep.subr.mxu0 0.0
          %1234 = vmatpush1.msra.mxu0 %v524
          %1235 = vmatprep.subr.mxu0 0.0
          %1236 = vmatpush2.msra.mxu0 0.0
          %1237 = vmatprep.subr.mxu0 0.0
          %1238 = vmatpush2.msra.mxu0 0.0
          %1239 = vmatprep.subr.mxu0 0.0
          %1240 = vmatpush2.msra.mxu0 0.0
          %1241 = vmatprep.subr.mxu0 0.0
          %1242 = vmatpush2.msra.mxu0 0.0
          %1243 = vmatprep.subr.mxu0 0.0
          %1244 = vmatpush2.msra.mxu0 0.0
          %1245 = vmatprep.subr.mxu0 0.0
          %1246 = vmatpush2.msra.mxu0 0.0
          %1247 = vmatprep.subr.mxu0 0.0
          %1248 = vmatpush2.msra.mxu0 0.0
          %1249 = vmatprep.subr.mxu0 0.0
          %1250 = vmatpush2.msra.mxu0 0.0
          %1251 = vmatprep.subr.mxu0 0.0
          %1252 = vmatpush2.msra.mxu0 0.0
          %1253 = vmatprep.subr.mxu0 0.0
          %1254 = vmatpush2.msra.mxu0 0.0
          %1255 = vmatprep.subr.mxu0 0.0
          %1256 = vmatpush2.msra.mxu0 0.0
          %1257 = vmatprep.subr.mxu0 0.0
          %1258 = vmatpush2.msra.mxu0 0.0
          %1259 = vmatprep.subr.mxu0 0.0
          %1260 = vmatpush2.msra.mxu0 0.0
          %1261 = vmatprep.subr.mxu0 0.0
          %1262 = vmatpush2.msra.mxu0 0.0
          %1263 = vmatprep.subr.mxu0 0.0
          %1264 = vmatpush2.msra.mxu0 0.0
          %1265 = vmatprep.subr.mxu0 0.0
          %1266 = vmatpush2.msra.mxu0 0.0
          %1267 = vmatprep.mubr.f32.mxu0 0.0
          %1268 = vmatmul.mubr.f32.gmra.mxu0 %v1201
          %v1269 = vpop.f32.mrf.mxu0
          %v1270 = vadd.f32 %v534, %v1269
          %v1271 = vpop.f32.mrf.mxu0
          %1272 = vdwg.mxu0
          %v1274 = vrot.slane %v1270, 4
          %v1276 = vadd.f32 %v521, %v1274
          %v1277 = vxor.u32 %v1276, 2147483648
          %v1278 = vmul.f32 %v1277, 1.442695
          %v1279 = vpow.pop %v1278
          %v1280 = vadd.f32 %v1279, 1.0
          %v1281 = vrcp.pop %v1280
          %v1282 = vmul.f32 1.0, %v1281
          %1283 = vrot.lane.b32.xlu0 %v1274, 64
          %v1284 = vpop.permute.xlu0 %1283
          %v1286 = vmul.f32 %v1282, %v1284
          %1288 = vrot.lane.b32.xlu0 %v1286, 64
          %v1289 = vpop.permute.xlu0 %1288
          %v1291 = vadd.f32 %v521, %v1289
          %v1292 = vtanh.pop %v1291
          %v1293 = vsub.f32 1.0, %v1282
          %1295 = vrot.lane.b32.xlu0 %v1292, 96
          %v1296 = vpop.permute.xlu0 %1295
          %v1298 = vmul.f32 %v1293, %v1296
          %v1299 = vrot.slane %v1191, 6
          %v1301 = vmul.f32 %v1282, %v1299
          %v1302 = vadd.f32 %v1298, %v1301
          %1304 = vrot.lane.b32.xlu0 %v1302, 96
          %v1305 = vpop.permute.xlu0 %1304
          %1307 = vst.msk [vmem:[#allocation2 + $0x2] sm:$0x10] %vm865, %v1305
          %1308 = vst.msk [vmem:[#allocation2 + $0x9] sm:$0x20] %vm867, %v1305
          %v1309 = vrot.slane %v1302, 4
          %1310 = vrot.lane.b32.xlu0 %v1309, 96
          %v1311 = vpop.permute.xlu0 %1310
          %v1312 = vsel %vm442, %v1311, 0
          %1314 = vmatprep.subr.mxu0 0.0
          %1315 = vmatpush1.msra.mxu0 0.0
          %1316 = vmatprep.subr.mxu0 0.0
          %1317 = vmatpush1.msra.mxu0 0.0
          %1318 = vmatprep.subr.mxu0 0.0
          %1319 = vmatpush1.msra.mxu0 0.0
          %1320 = vmatprep.subr.mxu0 0.0
          %1321 = vmatpush1.msra.mxu0 0.0
          %1322 = vmatprep.subr.mxu0 0.0
          %1323 = vmatpush1.msra.mxu0 0.0
          %1324 = vmatprep.subr.mxu0 0.0
          %1325 = vmatpush1.msra.mxu0 0.0
          %1326 = vmatprep.subr.mxu0 0.0
          %1327 = vmatpush1.msra.mxu0 0.0
          %1328 = vmatprep.subr.mxu0 0.0
          %1329 = vmatpush1.msra.mxu0 0.0
          %1330 = vmatprep.subr.mxu0 0.0
          %1331 = vmatpush1.msra.mxu0 0.0
          %1332 = vmatprep.subr.mxu0 0.0
          %1333 = vmatpush1.msra.mxu0 0.0
          %1334 = vmatprep.subr.mxu0 0.0
          %1335 = vmatpush1.msra.mxu0 0.0
          %1336 = vmatprep.subr.mxu0 0.0
          %1337 = vmatpush1.msra.mxu0 0.0
          %1338 = vmatprep.subr.mxu0 0.0
          %1339 = vmatpush1.msra.mxu0 %v527
          %1340 = vmatprep.subr.mxu0 0.0
          %1341 = vmatpush1.msra.mxu0 %v526
          %1342 = vmatprep.subr.mxu0 0.0
          %1343 = vmatpush1.msra.mxu0 %v525
          %1344 = vmatprep.subr.mxu0 0.0
          %1345 = vmatpush1.msra.mxu0 %v524
          %1346 = vmatprep.subr.mxu0 0.0
          %1347 = vmatpush2.msra.mxu0 0.0
          %1348 = vmatprep.subr.mxu0 0.0
          %1349 = vmatpush2.msra.mxu0 0.0
          %1350 = vmatprep.subr.mxu0 0.0
          %1351 = vmatpush2.msra.mxu0 0.0
          %1352 = vmatprep.subr.mxu0 0.0
          %1353 = vmatpush2.msra.mxu0 0.0
          %1354 = vmatprep.subr.mxu0 0.0
          %1355 = vmatpush2.msra.mxu0 0.0
          %1356 = vmatprep.subr.mxu0 0.0
          %1357 = vmatpush2.msra.mxu0 0.0
          %1358 = vmatprep.subr.mxu0 0.0
          %1359 = vmatpush2.msra.mxu0 0.0
          %1360 = vmatprep.subr.mxu0 0.0
          %1361 = vmatpush2.msra.mxu0 0.0
          %1362 = vmatprep.subr.mxu0 0.0
          %1363 = vmatpush2.msra.mxu0 0.0
          %1364 = vmatprep.subr.mxu0 0.0
          %1365 = vmatpush2.msra.mxu0 0.0
          %1366 = vmatprep.subr.mxu0 0.0
          %1367 = vmatpush2.msra.mxu0 0.0
          %1368 = vmatprep.subr.mxu0 0.0
          %1369 = vmatpush2.msra.mxu0 0.0
          %1370 = vmatprep.subr.mxu0 0.0
          %1371 = vmatpush2.msra.mxu0 0.0
          %1372 = vmatprep.subr.mxu0 0.0
          %1373 = vmatpush2.msra.mxu0 0.0
          %1374 = vmatprep.subr.mxu0 0.0
          %1375 = vmatpush2.msra.mxu0 0.0
          %1376 = vmatprep.subr.mxu0 0.0
          %1377 = vmatpush2.msra.mxu0 0.0
          %1378 = vmatprep.mubr.f32.mxu0 0.0
          %1379 = vmatmul.mubr.f32.gmra.mxu0 %v1312
          %v1380 = vpop.f32.mrf.mxu0
          %v1381 = vadd.f32 %v534, %v1380
          %v1382 = vpop.f32.mrf.mxu0
          %1383 = vdwg.mxu0
          %v1385 = vrot.slane %v1381, 2
          %v1387 = vadd.f32 %v521, %v1385
          %v1388 = vxor.u32 %v1387, 2147483648
          %v1389 = vmul.f32 %v1388, 1.442695
          %v1390 = vpow.pop %v1389
          %v1391 = vadd.f32 %v1390, 1.0
          %v1392 = vrcp.pop %v1391
          %v1393 = vmul.f32 1.0, %v1392
          %1394 = vrot.lane.b32.xlu0 %v1385, 64
          %v1395 = vpop.permute.xlu0 %1394
          %v1397 = vmul.f32 %v1393, %v1395
          %1399 = vrot.lane.b32.xlu0 %v1397, 64
          %v1400 = vpop.permute.xlu0 %1399
          %v1402 = vadd.f32 %v521, %v1400
          %v1403 = vtanh.pop %v1402
          %v1404 = vsub.f32 1.0, %v1393
          %1406 = vrot.lane.b32.xlu0 %v1403, 96
          %v1407 = vpop.permute.xlu0 %1406
          %v1409 = vmul.f32 %v1404, %v1407
          %v1410 = vrot.slane %v1302, 6
          %v1412 = vmul.f32 %v1393, %v1410
          %v1413 = vadd.f32 %v1409, %v1412
          %1415 = vrot.lane.b32.xlu0 %v1413, 96
          %v1416 = vpop.permute.xlu0 %1415
          %1418 = vst.msk [vmem:[#allocation2 + $0x1] sm:$0x40] %vm978, %v1416
          %1419 = vst.msk [vmem:[#allocation2 + $0x8] sm:$0x80] %vm980, %v1416
          %vm1420 = vcmask 261126
          %1421 = vst.msk [vmem:[#allocation3 - $0x6] sm:$0xc0] %vm1420, %v1416
        $region68: #{decoder_forward.1} parent=63 // pred_fallthru
          _
        %s1422 = smul.u32 %s25, 8
        %s1423 = scalar_lea.vmem [#allocation2], %s1422
        %v1424 = vld [vmem:[%s1423] sm:$0xff]
        %v1425 = vld [vmem:[%s417] sm:$0xff]
        %v1426 = vld [vmem:[%s417 + $0x8] sm:$0xf]
        %v1427 = vld [vmem:[%s420] sm:$0x1]
        %v1428 = vld [vmem:[%s8] sm:$0xff]
        %v1429 = vld [vmem:[%s8 + $0x8] sm:$0xff]
        %v1430 = vld [vmem:[%s8 + $0x10] sm:$0xff]
        %v1431 = vld [vmem:[%s8 + $0x18] sm:$0xff]
        %v1432 = vld [vmem:[%s8 + $0x20] sm:$0xff]
        %v1433 = vld [vmem:[%s8 + $0x28] sm:$0xff]
        %vm1434 = vcmask 392192
        %v1436 = vsel %vm1434, %v1425, 0
        %v1439 = vsel %vm1434, %v1426, 0
        %1441 = vmatprep.subr.mxu0 0.0
        %1442 = vmatpush1.msra.mxu0 0.0
        %1443 = vmatprep.subr.mxu0 0.0
        %1444 = vmatpush1.msra.mxu0 0.0
        %1445 = vmatprep.subr.mxu0 0.0
        %1446 = vmatpush1.msra.mxu0 0.0
        %1447 = vmatprep.subr.mxu0 0.0
        %1448 = vmatpush1.msra.mxu0 0.0
        %1449 = vmatprep.subr.mxu0 0.0
        %1450 = vmatpush1.msra.mxu0 0.0
        %1451 = vmatprep.subr.mxu0 0.0
        %1452 = vmatpush1.msra.mxu0 0.0
        %1453 = vmatprep.subr.mxu0 0.0
        %1454 = vmatpush1.msra.mxu0 0.0
        %1455 = vmatprep.subr.mxu0 0.0
        %1456 = vmatpush1.msra.mxu0 0.0
        %1457 = vmatprep.subr.mxu0 0.0
        %1458 = vmatpush1.msra.mxu0 0.0
        %1459 = vmatprep.subr.mxu0 0.0
        %1460 = vmatpush1.msra.mxu0 0.0
        %1461 = vmatprep.subr.mxu0 0.0
        %1462 = vmatpush1.msra.mxu0 %v1433
        %1463 = vmatprep.subr.mxu0 0.0
        %1464 = vmatpush1.msra.mxu0 %v1432
        %1465 = vmatprep.subr.mxu0 0.0
        %1466 = vmatpush1.msra.mxu0 %v1431
        %1467 = vmatprep.subr.mxu0 0.0
        %1468 = vmatpush1.msra.mxu0 %v1430
        %1469 = vmatprep.subr.mxu0 0.0
        %1470 = vmatpush1.msra.mxu0 %v1429
        %1471 = vmatprep.subr.mxu0 0.0
        %1472 = vmatpush1.msra.mxu0 %v1428
        %1473 = vmatprep.subr.mxu0 0.0
        %1474 = vmatpush2.msra.mxu0 0.0
        %1475 = vmatprep.subr.mxu0 0.0
        %1476 = vmatpush2.msra.mxu0 0.0
        %1477 = vmatprep.subr.mxu0 0.0
        %1478 = vmatpush2.msra.mxu0 0.0
        %1479 = vmatprep.subr.mxu0 0.0
        %1480 = vmatpush2.msra.mxu0 0.0
        %1481 = vmatprep.subr.mxu0 0.0
        %1482 = vmatpush2.msra.mxu0 0.0
        %1483 = vmatprep.subr.mxu0 0.0
        %1484 = vmatpush2.msra.mxu0 0.0
        %1485 = vmatprep.subr.mxu0 0.0
        %1486 = vmatpush2.msra.mxu0 0.0
        %1487 = vmatprep.subr.mxu0 0.0
        %1488 = vmatpush2.msra.mxu0 0.0
        %1489 = vmatprep.subr.mxu0 0.0
        %1490 = vmatpush2.msra.mxu0 0.0
        %1491 = vmatprep.subr.mxu0 0.0
        %1492 = vmatpush2.msra.mxu0 0.0
        %1493 = vmatprep.subr.mxu0 0.0
        %1494 = vmatpush2.msra.mxu0 0.0
        %1495 = vmatprep.subr.mxu0 0.0
        %1496 = vmatpush2.msra.mxu0 0.0
        %1497 = vmatprep.subr.mxu0 0.0
        %1498 = vmatpush2.msra.mxu0 0.0
        %1499 = vmatprep.subr.mxu0 0.0
        %1500 = vmatpush2.msra.mxu0 0.0
        %1501 = vmatprep.subr.mxu0 0.0
        %1502 = vmatpush2.msra.mxu0 0.0
        %1503 = vmatprep.subr.mxu0 0.0
        %1504 = vmatpush2.msra.mxu0 0.0
        %1505 = vmatprep.mubr.f32.mxu0 0.0
        %1506 = vmatmul.mubr.f32.gmra.mxu0 %v1436
        %v1507 = vpop.f32.mrf.mxu0
        %v1508 = vadd.f32 0.0, %v1507
        %v1509 = vpop.f32.mrf.mxu0
        %1510 = vmatprep.mubr.f32.mxu0 0.0
        %1511 = vmatmul.mubr.f32.gmra.mxu0 %v1439
        %v1512 = vpop.f32.mrf.mxu0
        %v1513 = vadd.f32 0.0, %v1512
        %v1514 = vpop.f32.mrf.mxu0
        %1515 = vdwg.mxu0
        %vm1516 = vcmask 261120
        %v1518 = vsel %vm1516, %v1424, 0
        %v1521 = vsel %vm1516, %v1508, 0
        %v1524 = vsel %vm1516, %v1513, 0
        %1526 = vmatprep.subr.mxu0 0.0
        %1527 = vmatpush1.xpose.msra.mxu0 0.0
        %1528 = vmatprep.subr.mxu0 0.0
        %1529 = vmatpush1.xpose.msra.mxu0 0.0
        %1530 = vmatprep.subr.mxu0 0.0
        %1531 = vmatpush1.xpose.msra.mxu0 0.0
        %1532 = vmatprep.subr.mxu0 0.0
        %1533 = vmatpush1.xpose.msra.mxu0 0.0
        %1534 = vmatprep.subr.mxu0 0.0
        %1535 = vmatpush1.xpose.msra.mxu0 0.0
        %1536 = vmatprep.subr.mxu0 0.0
        %1537 = vmatpush1.xpose.msra.mxu0 0.0
        %1538 = vmatprep.subr.mxu0 0.0
        %1539 = vmatpush1.xpose.msra.mxu0 0.0
        %1540 = vmatprep.subr.mxu0 0.0
        %1541 = vmatpush1.xpose.msra.mxu0 0.0
        %1542 = vmatprep.subr.mxu0 0.0
        %1543 = vmatpush1.xpose.msra.mxu0 0.0
        %1544 = vmatprep.subr.mxu0 0.0
        %1545 = vmatpush1.xpose.msra.mxu0 0.0
        %1546 = vmatprep.subr.mxu0 0.0
        %1547 = vmatpush1.xpose.msra.mxu0 0.0
        %1548 = vmatprep.subr.mxu0 0.0
        %1549 = vmatpush1.xpose.msra.mxu0 0.0
        %1550 = vmatprep.subr.mxu0 0.0
        %1551 = vmatpush1.xpose.msra.mxu0 0.0
        %1552 = vmatprep.subr.mxu0 0.0
        %1553 = vmatpush1.xpose.msra.mxu0 0.0
        %1554 = vmatprep.subr.mxu0 0.0
        %1555 = vmatpush1.xpose.msra.mxu0 %v1524
        %1556 = vmatprep.subr.mxu0 0.0
        %1557 = vmatpush1.xpose.msra.mxu0 %v1521
        %1558 = vmatprep.subr.mxu0 0.0
        %1559 = vmatpush2.xpose.msra.mxu0 0.0
        %1560 = vmatprep.subr.mxu0 0.0
        %1561 = vmatpush2.xpose.msra.mxu0 0.0
        %1562 = vmatprep.subr.mxu0 0.0
        %1563 = vmatpush2.xpose.msra.mxu0 0.0
        %1564 = vmatprep.subr.mxu0 0.0
        %1565 = vmatpush2.xpose.msra.mxu0 0.0
        %1566 = vmatprep.subr.mxu0 0.0
        %1567 = vmatpush2.xpose.msra.mxu0 0.0
        %1568 = vmatprep.subr.mxu0 0.0
        %1569 = vmatpush2.xpose.msra.mxu0 0.0
        %1570 = vmatprep.subr.mxu0 0.0
        %1571 = vmatpush2.xpose.msra.mxu0 0.0
        %1572 = vmatprep.subr.mxu0 0.0
        %1573 = vmatpush2.xpose.msra.mxu0 0.0
        %1574 = vmatprep.subr.mxu0 0.0
        %1575 = vmatpush2.xpose.msra.mxu0 0.0
        %1576 = vmatprep.subr.mxu0 0.0
        %1577 = vmatpush2.xpose.msra.mxu0 0.0
        %1578 = vmatprep.subr.mxu0 0.0
        %1579 = vmatpush2.xpose.msra.mxu0 0.0
        %1580 = vmatprep.subr.mxu0 0.0
        %1581 = vmatpush2.xpose.msra.mxu0 0.0
        %1582 = vmatprep.subr.mxu0 0.0
        %1583 = vmatpush2.xpose.msra.mxu0 0.0
        %1584 = vmatprep.subr.mxu0 0.0
        %1585 = vmatpush2.xpose.msra.mxu0 0.0
        %1586 = vmatprep.subr.mxu0 0.0
        %1587 = vmatpush2.xpose.msra.mxu0 0.0
        %1588 = vmatprep.subr.mxu0 0.0
        %1589 = vmatpush2.xpose.msra.mxu0 0.0
        %1590 = vmatprep.mubr.f32.mxu0 0.0
        %1591 = vmatmul.mubr.f32.gmra.mxu0 %v1518
        %v1592 = vpop.f32.mrf.mxu0
        %v1593 = vadd.f32 0.0, %v1592
        %v1594 = vpop.f32.mrf.mxu0
        %1595 = vdwg.mxu0
        %vm1596 = vcmp.gt.f32.partialorder %v1427, 0.5
        %v1597 = vsel %vm1596, 1, 0
        %v1598 = vlaneseq
        %v1599 = vshrl.u32 %v1598, 7
        %v1600 = vsub.s32 0, %v1599
        %v1601 = vrot.slane %v1597, %v1600
        %vm1602 = vcmp.eq.s32.totalorder %v1601, 1
        %v1603 = vsel %vm1602, -inf, %v1593
        %vm1604 = vcmask 97280
        %v1605 = vsel %vm1604, %v1603, -inf
        %1606 = vmax.xlane.f32.xlu0 %v1605
        %v1607 = vpop.xlane.xlu0 %1606
        %v1608 = vsub.f32 %v1603, %v1607
        %v1609 = vmul.f32 %v1608, 1.442695
        %v1610 = vpow.pop %v1609
        %v1611 = vsel %vm1604, %v1610, 0.0
        %1612 = vadd.xlane.f32.xlu0 %v1611
        %v1613 = vpop.xlane.xlu0 %1612
        %v1614 = vrcp.pop %v1613
        %v1615 = vmul.f32 %v1610, %v1614
        %v1617 = vsel %vm1604, %v1615, 0
        %vm1619 = vcmask 1043456
        %v1620 = vsel %vm1619, %v1426, 0
        %1622 = vmatprep.subr.mxu0 0.0
        %1623 = vmatpush1.msra.mxu0 0.0
        %1624 = vmatprep.subr.mxu0 0.0
        %1625 = vmatpush1.msra.mxu0 0.0
        %1626 = vmatprep.subr.mxu0 0.0
        %1627 = vmatpush1.msra.mxu0 0.0
        %1628 = vmatprep.subr.mxu0 0.0
        %1629 = vmatpush1.msra.mxu0 0.0
        %1630 = vmatprep.subr.mxu0 0.0
        %1631 = vmatpush1.msra.mxu0 0.0
        %1632 = vmatprep.subr.mxu0 0.0
        %1633 = vmatpush1.msra.mxu0 0.0
        %1634 = vmatprep.subr.mxu0 0.0
        %1635 = vmatpush1.msra.mxu0 0.0
        %1636 = vmatprep.subr.mxu0 0.0
        %1637 = vmatpush1.msra.mxu0 0.0
        %1638 = vmatprep.subr.mxu0 0.0
        %1639 = vmatpush1.msra.mxu0 0.0
        %1640 = vmatprep.subr.mxu0 0.0
        %1641 = vmatpush1.msra.mxu0 0.0
        %1642 = vmatprep.subr.mxu0 0.0
        %1643 = vmatpush1.msra.mxu0 0.0
        %1644 = vmatprep.subr.mxu0 0.0
        %1645 = vmatpush1.msra.mxu0 0.0
        %1646 = vmatprep.subr.mxu0 0.0
        %1647 = vmatpush1.msra.mxu0 0.0
        %1648 = vmatprep.subr.mxu0 0.0
        %1649 = vmatpush1.msra.mxu0 0.0
        %1650 = vmatprep.subr.mxu0 0.0
        %1651 = vmatpush1.msra.mxu0 %v1620
        %1652 = vmatprep.subr.mxu0 0.0
        %1653 = vmatpush1.msra.mxu0 %v1425
        %1654 = vmatprep.subr.mxu0 0.0
        %1655 = vmatpush2.msra.mxu0 0.0
        %1656 = vmatprep.subr.mxu0 0.0
        %1657 = vmatpush2.msra.mxu0 0.0
        %1658 = vmatprep.subr.mxu0 0.0
        %1659 = vmatpush2.msra.mxu0 0.0
        %1660 = vmatprep.subr.mxu0 0.0
        %1661 = vmatpush2.msra.mxu0 0.0
        %1662 = vmatprep.subr.mxu0 0.0
        %1663 = vmatpush2.msra.mxu0 0.0
        %1664 = vmatprep.subr.mxu0 0.0
        %1665 = vmatpush2.msra.mxu0 0.0
        %1666 = vmatprep.subr.mxu0 0.0
        %1667 = vmatpush2.msra.mxu0 0.0
        %1668 = vmatprep.subr.mxu0 0.0
        %1669 = vmatpush2.msra.mxu0 0.0
        %1670 = vmatprep.subr.mxu0 0.0
        %1671 = vmatpush2.msra.mxu0 0.0
        %1672 = vmatprep.subr.mxu0 0.0
        %1673 = vmatpush2.msra.mxu0 0.0
        %1674 = vmatprep.subr.mxu0 0.0
        %1675 = vmatpush2.msra.mxu0 0.0
        %1676 = vmatprep.subr.mxu0 0.0
        %1677 = vmatpush2.msra.mxu0 0.0
        %1678 = vmatprep.subr.mxu0 0.0
        %1679 = vmatpush2.msra.mxu0 0.0
        %1680 = vmatprep.subr.mxu0 0.0
        %1681 = vmatpush2.msra.mxu0 0.0
        %1682 = vmatprep.subr.mxu0 0.0
        %1683 = vmatpush2.msra.mxu0 0.0
        %1684 = vmatprep.subr.mxu0 0.0
        %1685 = vmatpush2.msra.mxu0 0.0
        %1686 = vmatprep.mubr.f32.mxu0 0.0
        %1687 = vmatmul.mubr.f32.gmra.mxu0 %v1617
        %v1688 = vpop.f32.mrf.mxu0
        %v1689 = vadd.f32 0.0, %v1688
        %v1690 = vpop.f32.mrf.mxu0
        %1691 = vdwg.mxu0
        %1692 = vrot.lane.b32.xlu0 %v1424, 48
        %v1693 = vpop.permute.xlu0 %1692
        %v1695 = vsel %vm1434, %v1689, %v1693
        %v1696 = vld [vmem:[%s9] sm:$0xff]
        %v1697 = vld [vmem:[%s9 + $0x8] sm:$0xff]
        %v1698 = vld [vmem:[%s9 + $0x10] sm:$0xff]
        %v1699 = vld [vmem:[%s9 + $0x18] sm:$0xff]
        %v1700 = vld [vmem:[%s9 + $0x20] sm:$0xff]
        %v1701 = vld [vmem:[%s9 + $0x28] sm:$0xff]
        %v1702 = vld [vmem:[%s9 + $0x30] sm:$0xff]
        %v1703 = vld [vmem:[%s9 + $0x38] sm:$0xff]
        %v1704 = vld [vmem:[%s9 + $0x40] sm:$0xff]
        %v1705 = vld [vmem:[%s9 + $0x48] sm:$0xff]
        %vm1706 = vcmask 654336
        %v1708 = vsel %vm1706, %v1695, 0
        %1710 = vmatprep.subr.mxu0 0.0
        %1711 = vmatpush1.msra.mxu0 0.0
        %1712 = vmatprep.subr.mxu0 0.0
        %1713 = vmatpush1.msra.mxu0 0.0
        %1714 = vmatprep.subr.mxu0 0.0
        %1715 = vmatpush1.msra.mxu0 0.0
        %1716 = vmatprep.subr.mxu0 0.0
        %1717 = vmatpush1.msra.mxu0 0.0
        %1718 = vmatprep.subr.mxu0 0.0
        %1719 = vmatpush1.msra.mxu0 0.0
        %1720 = vmatprep.subr.mxu0 0.0
        %1721 = vmatpush1.msra.mxu0 0.0
        %1722 = vmatprep.subr.mxu0 0.0
        %1723 = vmatpush1.msra.mxu0 %v1705
        %1724 = vmatprep.subr.mxu0 0.0
        %1725 = vmatpush1.msra.mxu0 %v1704
        %1726 = vmatprep.subr.mxu0 0.0
        %1727 = vmatpush1.msra.mxu0 %v1703
        %1728 = vmatprep.subr.mxu0 0.0
        %1729 = vmatpush1.msra.mxu0 %v1702
        %1730 = vmatprep.subr.mxu0 0.0
        %1731 = vmatpush1.msra.mxu0 %v1701
        %1732 = vmatprep.subr.mxu0 0.0
        %1733 = vmatpush1.msra.mxu0 %v1700
        %1734 = vmatprep.subr.mxu0 0.0
        %1735 = vmatpush1.msra.mxu0 %v1699
        %1736 = vmatprep.subr.mxu0 0.0
        %1737 = vmatpush1.msra.mxu0 %v1698
        %1738 = vmatprep.subr.mxu0 0.0
        %1739 = vmatpush1.msra.mxu0 %v1697
        %1740 = vmatprep.subr.mxu0 0.0
        %1741 = vmatpush1.msra.mxu0 %v1696
        %1742 = vmatprep.subr.mxu0 0.0
        %1743 = vmatpush2.msra.mxu0 0.0
        %1744 = vmatprep.subr.mxu0 0.0
        %1745 = vmatpush2.msra.mxu0 0.0
        %1746 = vmatprep.subr.mxu0 0.0
        %1747 = vmatpush2.msra.mxu0 0.0
        %1748 = vmatprep.subr.mxu0 0.0
        %1749 = vmatpush2.msra.mxu0 0.0
        %1750 = vmatprep.subr.mxu0 0.0
        %1751 = vmatpush2.msra.mxu0 0.0
        %1752 = vmatprep.subr.mxu0 0.0
        %1753 = vmatpush2.msra.mxu0 0.0
        %1754 = vmatprep.subr.mxu0 0.0
        %1755 = vmatpush2.msra.mxu0 0.0
        %1756 = vmatprep.subr.mxu0 0.0
        %1757 = vmatpush2.msra.mxu0 0.0
        %1758 = vmatprep.subr.mxu0 0.0
        %1759 = vmatpush2.msra.mxu0 0.0
        %1760 = vmatprep.subr.mxu0 0.0
        %1761 = vmatpush2.msra.mxu0 0.0
        %1762 = vmatprep.subr.mxu0 0.0
        %1763 = vmatpush2.msra.mxu0 0.0
        %1764 = vmatprep.subr.mxu0 0.0
        %1765 = vmatpush2.msra.mxu0 0.0
        %1766 = vmatprep.subr.mxu0 0.0
        %1767 = vmatpush2.msra.mxu0 0.0
        %1768 = vmatprep.subr.mxu0 0.0
        %1769 = vmatpush2.msra.mxu0 0.0
        %1770 = vmatprep.subr.mxu0 0.0
        %1771 = vmatpush2.msra.mxu0 0.0
        %1772 = vmatprep.subr.mxu0 0.0
        %1773 = vmatpush2.msra.mxu0 0.0
        %1774 = vmatprep.mubr.f32.mxu0 0.0
        %1775 = vmatmul.mubr.f32.gmra.mxu0 %v1708
        %v1776 = vpop.f32.mrf.mxu0
        %v1777 = vadd.f32 0.0, %v1776
        %v1778 = vpop.f32.mrf.mxu0
        %1779 = vdwg.mxu0
        %v1780 = vtanh.pop %v1777
        %v1781 = vld [vmem:[%s10] sm:$0xff]
        %v1782 = vld [vmem:[%s10 + $0x8] sm:$0xff]
        %v1783 = vld [vmem:[%s10 + $0x10] sm:$0xff]
        %v1784 = vld [vmem:[%s10 + $0x18] sm:$0xff]
        %v1786 = vsel %vm1516, %v1780, 0
        %1788 = vmatprep.subr.mxu0 0.0
        %1789 = vmatpush1.msra.mxu0 0.0
        %1790 = vmatprep.subr.mxu0 0.0
        %1791 = vmatpush1.msra.mxu0 0.0
        %1792 = vmatprep.subr.mxu0 0.0
        %1793 = vmatpush1.msra.mxu0 0.0
        %1794 = vmatprep.subr.mxu0 0.0
        %1795 = vmatpush1.msra.mxu0 0.0
        %1796 = vmatprep.subr.mxu0 0.0
        %1797 = vmatpush1.msra.mxu0 0.0
        %1798 = vmatprep.subr.mxu0 0.0
        %1799 = vmatpush1.msra.mxu0 0.0
        %1800 = vmatprep.subr.mxu0 0.0
        %1801 = vmatpush1.msra.mxu0 0.0
        %1802 = vmatprep.subr.mxu0 0.0
        %1803 = vmatpush1.msra.mxu0 0.0
        %1804 = vmatprep.subr.mxu0 0.0
        %1805 = vmatpush1.msra.mxu0 0.0
        %1806 = vmatprep.subr.mxu0 0.0
        %1807 = vmatpush1.msra.mxu0 0.0
        %1808 = vmatprep.subr.mxu0 0.0
        %1809 = vmatpush1.msra.mxu0 0.0
        %1810 = vmatprep.subr.mxu0 0.0
        %1811 = vmatpush1.msra.mxu0 0.0
        %1812 = vmatprep.subr.mxu0 0.0
        %1813 = vmatpush1.msra.mxu0 %v1784
        %1814 = vmatprep.subr.mxu0 0.0
        %1815 = vmatpush1.msra.mxu0 %v1783
        %1816 = vmatprep.subr.mxu0 0.0
        %1817 = vmatpush1.msra.mxu0 %v1782
        %1818 = vmatprep.subr.mxu0 0.0
        %1819 = vmatpush1.msra.mxu0 %v1781
        %1820 = vmatprep.subr.mxu0 0.0
        %1821 = vmatpush2.msra.mxu0 0.0
        %1822 = vmatprep.subr.mxu0 0.0
        %1823 = vmatpush2.msra.mxu0 0.0
        %1824 = vmatprep.subr.mxu0 0.0
        %1825 = vmatpush2.msra.mxu0 0.0
        %1826 = vmatprep.subr.mxu0 0.0
        %1827 = vmatpush2.msra.mxu0 0.0
        %1828 = vmatprep.subr.mxu0 0.0
        %1829 = vmatpush2.msra.mxu0 0.0
        %1830 = vmatprep.subr.mxu0 0.0
        %1831 = vmatpush2.msra.mxu0 0.0
        %1832 = vmatprep.subr.mxu0 0.0
        %1833 = vmatpush2.msra.mxu0 0.0
        %1834 = vmatprep.subr.mxu0 0.0
        %1835 = vmatpush2.msra.mxu0 0.0
        %1836 = vmatprep.subr.mxu0 0.0
        %1837 = vmatpush2.msra.mxu0 0.0
        %1838 = vmatprep.subr.mxu0 0.0
        %1839 = vmatpush2.msra.mxu0 0.0
        %1840 = vmatprep.subr.mxu0 0.0
        %1841 = vmatpush2.msra.mxu0 0.0
        %1842 = vmatprep.subr.mxu0 0.0
        %1843 = vmatpush2.msra.mxu0 0.0
        %1844 = vmatprep.subr.mxu0 0.0
        %1845 = vmatpush2.msra.mxu0 0.0
        %1846 = vmatprep.subr.mxu0 0.0
        %1847 = vmatpush2.msra.mxu0 0.0
        %1848 = vmatprep.subr.mxu0 0.0
        %1849 = vmatpush2.msra.mxu0 0.0
        %1850 = vmatprep.subr.mxu0 0.0
        %1851 = vmatpush2.msra.mxu0 0.0
        %1852 = vmatprep.mubr.f32.mxu0 0.0
        %1853 = vmatmul.mubr.f32.gmra.mxu0 %v1786
        %v1854 = vpop.f32.mrf.mxu0
        %v1855 = vadd.f32 0.0, %v1854
        %v1856 = vpop.f32.mrf.mxu0
        %1857 = vdwg.mxu0
        %1858 = vrot.lane.b32.xlu0 %v1508, 96
        %v1859 = vpop.permute.xlu0 %1858
        %1860 = vrot.lane.b32.xlu0 %v1513, 96
        %v1861 = vpop.permute.xlu0 %1860
        %v1862 = vsel %vm1516, %v1859, 0
        %v1864 = vsel %vm1516, %v1861, 0
        %1866 = vmatprep.subr.mxu0 0.0
        %1867 = vmatpush1.xpose.msra.mxu0 0.0
        %1868 = vmatprep.subr.mxu0 0.0
        %1869 = vmatpush1.xpose.msra.mxu0 0.0
        %1870 = vmatprep.subr.mxu0 0.0
        %1871 = vmatpush1.xpose.msra.mxu0 0.0
        %1872 = vmatprep.subr.mxu0 0.0
        %1873 = vmatpush1.xpose.msra.mxu0 0.0
        %1874 = vmatprep.subr.mxu0 0.0
        %1875 = vmatpush1.xpose.msra.mxu0 0.0
        %1876 = vmatprep.subr.mxu0 0.0
        %1877 = vmatpush1.xpose.msra.mxu0 0.0
        %1878 = vmatprep.subr.mxu0 0.0
        %1879 = vmatpush1.xpose.msra.mxu0 0.0
        %1880 = vmatprep.subr.mxu0 0.0
        %1881 = vmatpush1.xpose.msra.mxu0 0.0
        %1882 = vmatprep.subr.mxu0 0.0
        %1883 = vmatpush1.xpose.msra.mxu0 0.0
        %1884 = vmatprep.subr.mxu0 0.0
        %1885 = vmatpush1.xpose.msra.mxu0 0.0
        %1886 = vmatprep.subr.mxu0 0.0
        %1887 = vmatpush1.xpose.msra.mxu0 0.0
        %1888 = vmatprep.subr.mxu0 0.0
        %1889 = vmatpush1.xpose.msra.mxu0 0.0
        %1890 = vmatprep.subr.mxu0 0.0
        %1891 = vmatpush1.xpose.msra.mxu0 0.0
        %1892 = vmatprep.subr.mxu0 0.0
        %1893 = vmatpush1.xpose.msra.mxu0 0.0
        %1894 = vmatprep.subr.mxu0 0.0
        %1895 = vmatpush1.xpose.msra.mxu0 %v1864
        %1896 = vmatprep.subr.mxu0 0.0
        %1897 = vmatpush1.xpose.msra.mxu0 %v1862
        %1898 = vmatprep.subr.mxu0 0.0
        %1899 = vmatpush2.xpose.msra.mxu0 0.0
        %1900 = vmatprep.subr.mxu0 0.0
        %1901 = vmatpush2.xpose.msra.mxu0 0.0
        %1902 = vmatprep.subr.mxu0 0.0
        %1903 = vmatpush2.xpose.msra.mxu0 0.0
        %1904 = vmatprep.subr.mxu0 0.0
        %1905 = vmatpush2.xpose.msra.mxu0 0.0
        %1906 = vmatprep.subr.mxu0 0.0
        %1907 = vmatpush2.xpose.msra.mxu0 0.0
        %1908 = vmatprep.subr.mxu0 0.0
        %1909 = vmatpush2.xpose.msra.mxu0 0.0
        %1910 = vmatprep.subr.mxu0 0.0
        %1911 = vmatpush2.xpose.msra.mxu0 0.0
        %1912 = vmatprep.subr.mxu0 0.0
        %1913 = vmatpush2.xpose.msra.mxu0 0.0
        %1914 = vmatprep.subr.mxu0 0.0
        %1915 = vmatpush2.xpose.msra.mxu0 0.0
        %1916 = vmatprep.subr.mxu0 0.0
        %1917 = vmatpush2.xpose.msra.mxu0 0.0
        %1918 = vmatprep.subr.mxu0 0.0
        %1919 = vmatpush2.xpose.msra.mxu0 0.0
        %1920 = vmatprep.subr.mxu0 0.0
        %1921 = vmatpush2.xpose.msra.mxu0 0.0
        %1922 = vmatprep.subr.mxu0 0.0
        %1923 = vmatpush2.xpose.msra.mxu0 0.0
        %1924 = vmatprep.subr.mxu0 0.0
        %1925 = vmatpush2.xpose.msra.mxu0 0.0
        %1926 = vmatprep.subr.mxu0 0.0
        %1927 = vmatpush2.xpose.msra.mxu0 0.0
        %1928 = vmatprep.subr.mxu0 0.0
        %1929 = vmatpush2.xpose.msra.mxu0 0.0
        %1930 = vmatprep.mubr.f32.mxu0 0.0
        %1931 = vmatmul.mubr.f32.gmra.mxu0 %v1786
        %v1932 = vpop.f32.mrf.mxu0
        %v1933 = vadd.f32 0.0, %v1932
        %v1934 = vpop.f32.mrf.mxu0
        %1935 = vdwg.mxu0
        %v1936 = vsel %vm1602, -inf, %v1933
        %1938 = vrot.lane.b32.xlu0 %v1855, 32
        %v1939 = vpop.permute.xlu0 %1938
        %1942 = vrot.lane.b32.xlu0 %v1936, 96
        %v1943 = vpop.permute.xlu0 %1942
        %v1945 = vsel %vm1516, %v1780, %v1939
        %vm1946 = vcmask 785408
        %v1947 = vsel %vm1946, %v1945, %v1943
        %vm1948 = vcmask 883712
        %v1949 = vsel %vm1948, %v1947, 0.0
        %1950 = vst [vmem:[%s424] sm:$0xff] %v1949
        %p1951 = scmp.lt.s32.totalorder %s25, 1
        %s1952 = scalar_select %p1951, %s25, 1
        %s1953 = smul.addr %s1952, 8
        %s1954 = scalar_lea.vmem %s11, %s1953
        // Predicated region
        $region69: #{decoder_forward.1} parent=63 // pred_check
          %p1955 = pneg %p284
        $region70: #{decoder_forward.1} parent=63 // pred_check_branch
          %1957 = sbr.rel (%p1955) target = $region72
        $region71: #{decoder_forward.1} parent=63 // pred_region
          _
        $region72: #{decoder_forward.1} parent=63 // pred_fallthru
          _
        // Predicated region
        $region73: #{decoder_forward.1} parent=63 // pred_check
          %p1958 = pneg %p305
        $region74: #{decoder_forward.1} parent=63 // pred_check_branch
          %1960 = sbr.rel (%p1958) target = $region76
        $region75: #{decoder_forward.1} parent=63 // pred_region
          %s1962 = ssub.s32 32, 32
          %1963 = vsyncadd [#allocation4], %s1962
          %s1965 = sshll.u32 [#allocation3], 4
          %s1966 = int_to_ptr.vmem [resolvable:$true] %s1965
          %1968 = dma.vmem_to_hbm [thread:$0]  %s1966, 32, %s12, [#allocation4]
        $region76: #{decoder_forward.1} parent=63 // pred_fallthru
          _
        // Predicated region
        $region77: #{decoder_forward.1} parent=63 // pred_check
          %p1969 = pneg %p305
        $region78: #{decoder_forward.1} parent=63 // pred_check_branch
          %1971 = sbr.rel (%p1969) target = $region80
        $region79: #{decoder_forward.1} parent=63 // pred_region
          %1972 = dma.done [#allocation4], 32
        $region80: #{decoder_forward.1} parent=63 // pred_fallthru
          _
      $region64: #{decoder_forward.1} parent=5 // pred_fallthru
        _
      %p1973 = scmp.le.s32.totalorder 2, %s20
      // Predicated region
      $region81: #{decoder_forward.1} parent=5 // pred_check
        %p1974 = pneg %p1973
      $region82: #{decoder_forward.1} parent=5 // pred_check_branch
        %1976 = sbr.rel (%p1974) target = $region84
      $region83: #{decoder_forward.1} parent=5 // pred_region
        %s1977 = ssub.s32 %s20, 2
        // Predicated region
        $region85: #{decoder_forward.1} parent=83 // pred_check
          %p1978 = pneg %p290
        $region86: #{decoder_forward.1} parent=83 // pred_check_branch
          %1980 = sbr.rel (%p1978) target = $region88
        $region87: #{decoder_forward.1} parent=83 // pred_region
          %p1981 = scmp.lt.s32.totalorder %s26, 1
          %s1982 = scalar_select %p1981, %s26, 1
          %s1983 = smul.addr %s1982, 8
          %s1984 = scalar_lea.vmem %s11, %s1983
        $region88: #{decoder_forward.1} parent=83 // pred_fallthru
          _
      $region84: #{decoder_forward.1} parent=5 // pred_fallthru
        _
    $region6: #{decoder_forward.1} parent=1 // loop_footer
      %s24 = sadd.s32 1, %s20
    $region7: #{decoder_forward.1} parent=1 // loop_footer_branch
      %19 = sbr.rel target = $region3
    $region8: #{decoder_forward.1} parent=1 // loop_exit
      _
    %1985 = vsyncpa [#allocation4], 1
    %s1986 = scalar_lea.sflag [#allocation4], 1
    %1987 = vsyncpa %s1986, 1

</llo_original>
